<compile_context>
chip_gen: v7x
topology: tpu7x:2x2x1
jax: 0.10.0
libtpu: 0.0.40
codegen_flags: <defaults>
</compile_context>

<pallas_src>
import jax
import jax.numpy as jnp
from jax import lax
from jax.experimental import pallas as pl
from jax.experimental.pallas import tpu as pltpu


def _round_up(x, m):
    return ((x + m - 1) // m) * m


# ----------------------------------------------------------------------------
# Kernel: bag-of-words counts for one (batch, vocab) tile.
#   ids_ref : (C, TB, 128) int32  -- all 128-token chunks of this batch tile
#   out_ref : (TB, TV)     float32 -- counts for this (batch, vocab) tile
# ----------------------------------------------------------------------------
def _bow_count_kernel(ids_ref, out_ref):
    n_chunks, TB, CHUNK = ids_ref.shape
    TV = out_ref.shape[-1]

    # Vocab ids covered by this tile, hoisted once.  At TB <= 16, TV <= 512 this
    # is <= 8 vregs (the review's 32-vreg problem came from TB = 64); keeping it
    # fully broadcast avoids a per-token sublane re-broadcast inside the loop.
    v_base = pl.program_id(1) * TV
    vocab = v_base + lax.broadcasted_iota(jnp.int32, (TB, TV), 1)

    def chunk_body(c, acc):
        toks = ids_ref[c]                   # (TB, 128): one lane-dense vreg load
        for t in range(CHUNK):              # static unroll inside the fori body;
            tok = toks[:, t:t + 1]          # per-token temps die immediately, so
            # cmp + cvt + add per acc vreg.  (jnp.where(eq, acc + 1, acc) is the
            # alternative lowering -- same static op count; pick via bundle dump.)
            acc = acc + (tok == vocab).astype(jnp.int32)
        return acc

    acc = lax.fori_loop(0, n_chunks, chunk_body,
                        jnp.zeros((TB, TV), jnp.int32))

    # Single int32 -> f32 cast; exact for per-row counts < 2^24 (~16.7M tokens).
    out_ref[...] = acc.astype(jnp.float32)


def bow_counts(token_ids, embedding_size, *, tb=None, tv=None, chunk=128):
    """Dense float32 BoW count matrix [B, embedding_size] from int32 token ids."""
    B, S = token_ids.shape
    V = int(embedding_size)

    # ---- vocab tiling: lane-dense and divides padded vocab exactly ----------
    Vp = _round_up(max(V, 128), 128)
    if tv is None:
        tv = Vp if Vp <= 512 else max(t for t in (512, 384, 256, 128) if Vp % t == 0)
    assert Vp % tv == 0 and tv % 128 == 0
    n_vocab_tiles = Vp // tv

    # ---- batch tiling: minimal padding, small accumulator, >=2 parallel tiles
    if tb is None:
        if B >= 16:
            tb = min((16, 8), key=lambda t: (_round_up(B, t) - B, -t))
            if n_vocab_tiles == 1 and _round_up(B, tb) // tb < 2:
                tb = 8          # keep both v7x TensorCores busy on small shapes
        else:
            tb = 8
    Bp = _round_up(B, tb)

    # ---- sequence: pad to the 128-token chunk; chunks on the leading axis ---
    Sp = _round_up(max(S, chunk), chunk)
    n_chunks = Sp // chunk

    ids = token_ids.astype(jnp.int32)
    ids = jnp.pad(ids, ((0, Bp - B), (0, Sp - S)), constant_values=-1)  # -1 = pad
    ids = ids.reshape(Bp, n_chunks, chunk).transpose(1, 0, 2)           # (C, Bp, 128)

    grid = (Bp // tb, Vp // tv)     # both parallel; sequence reduced in-kernel

    out = pl.pallas_call(
        _bow_count_kernel,
        out_shape=jax.ShapeDtypeStruct((Bp, Vp), jnp.float32),
        grid_spec=pltpu.PrefetchScalarGridSpec(
            num_scalar_prefetch=0,
            grid=grid,
            # The ids block index is independent of the (fastest-varying) vocab
            # axis, so each batch tile's ids are DMA'd once and reused.
            in_specs=[pl.BlockSpec((n_chunks, tb, chunk), lambda b, v: (0, b, 0))],
            out_specs=pl.BlockSpec((tb, tv), lambda b, v: (b, v)),
        ),
        compiler_params=pltpu.CompilerParams(
            dimension_semantics=("parallel", "parallel"),
        ),
    )(ids)

    # Padded vocab columns [V:Vp) may hold counts for out-of-range ids; they are
    # stripped here together with the batch padding.
    return out[:B, :V]


# ----------------------------------------------------------------------------
# forward(texts) -> texts.  Identity: no kernel, no copy (matches the module).
# ----------------------------------------------------------------------------
def bow_forward(texts):
    return texts


if __name__ == "__main__":
    key = jax.random.PRNGKey(0)
    k1, k2 = jax.random.split(key)

    # Case 1: synthetic "fitted" vocabulary of 31 words -> embedding_size = 32.
    vocab_size = 31
    embedding_size = vocab_size + 1
    B, S = 8, 16
    token_ids = jax.random.randint(k1, (B, S), 0, vocab_size, dtype=jnp.int32)

    texts = jax.block_until_ready(bow_counts(token_ids, embedding_size))
    ref = jnp.sum(
        (token_ids[:, :, None]
         == jnp.arange(embedding_size, dtype=jnp.int32)[None, None, :]
         ).astype(jnp.float32),
        axis=1,
    )
    assert texts.shape == (B, embedding_size) and texts.dtype == jnp.float32
    assert bool(jnp.allclose(texts, ref)), "BoW counts mismatch (small case)"

    # Case 2: exercises batch padding, a multi-chunk in-kernel seq reduction and
    # a multi-tile (batch x vocab) parallel grid.
    B2, S2, V2 = 10, 200, 700                 # embedding_size = 701
    ids2 = jax.random.randint(k2, (B2, S2), 0, V2, dtype=jnp.int32)
    texts2 = jax.block_until_ready(bow_counts(ids2, V2 + 1))
    ref2 = jnp.sum(
        (ids2[:, :, None]
         == jnp.arange(V2 + 1, dtype=jnp.int32)[None, None, :]
         ).astype(jnp.float32),
        axis=1,
    )
    assert texts2.shape == (B2, V2 + 1) and texts2.dtype == jnp.float32
    assert bool(jnp.allclose(texts2, ref2)), "BoW counts mismatch (tiled case)"

    # forward(texts) == texts (identity pass-through, as in the PyTorch module).
    out = bow_forward(texts)
    assert out is texts

    print("KERNEL_OK")
</pallas_src>

<mosaic_0001>
module attributes {stable_mosaic.version = 11 : i64} {
  func.func @_bow_count_kernel(%arg0: i32, %arg1: i32, %arg2: memref<1x8x128xi32, #tpu.memory_space<vmem>>, %arg3: memref<8x128xf32, #tpu.memory_space<vmem>>) attributes {dimension_semantics = [#tpu.dimension_semantics<parallel>, #tpu.dimension_semantics<parallel>], iteration_bounds = array<i64: 1, 1>, scalar_prefetch = 0 : i64, scratch_operands = 0 : i64, tpu.core_type = #tpu.core_type<tc>, window_params = [{transform_indices = @transform_0, window_bounds = array<i64: 1, 8, 128>}, {transform_indices = @transform_1, window_bounds = array<i64: 8, 128>}]} {
    %c128_i32 = arith.constant 128 : i32
    %0 = arith.muli %arg1, %c128_i32 : i32
    %1 = tpu.iota {dimensions = array<i32: 1>} : vector<8x128xi32>
    %2 = vector.broadcast %0 : i32 to vector<8x128xi32>
    %3 = arith.addi %2, %1 : vector<8x128xi32>
    %c0_i32 = arith.constant 0 : i32
    %4 = vector.broadcast %c0_i32 : i32 to vector<8x128xi32>
    %c0_i32_0 = arith.constant 0 : i32
    %5 = arith.index_cast %c0_i32_0 : i32 to index
    %c0 = arith.constant 0 : index
    %c0_1 = arith.constant 0 : index
    %6 = vector.load %arg2[%5, %c0, %c0_1] : memref<1x8x128xi32, #tpu.memory_space<vmem>>, vector<1x8x128xi32>
    %7 = vector.shape_cast %6 : vector<1x8x128xi32> to vector<8x128xi32>
    %8 = vector.extract_strided_slice %7 {offsets = [0, 0], sizes = [8, 1], strides = [1, 1]} : vector<8x128xi32> to vector<8x1xi32>
    %9 = vector.broadcast %8 : vector<8x1xi32> to vector<8x128xi32>
    %10 = arith.cmpi eq, %9, %3 : vector<8x128xi32>
    %11 = arith.extui %10 : vector<8x128xi1> to vector<8x128xi32>
    %12 = arith.addi %4, %11 : vector<8x128xi32>
    %13 = vector.extract_strided_slice %7 {offsets = [0, 1], sizes = [8, 1], strides = [1, 1]} : vector<8x128xi32> to vector<8x1xi32>
    %14 = vector.broadcast %13 : vector<8x1xi32> to vector<8x128xi32>
    %15 = arith.cmpi eq, %14, %3 : vector<8x128xi32>
    %16 = arith.extui %15 : vector<8x128xi1> to vector<8x128xi32>
    %17 = arith.addi %12, %16 : vector<8x128xi32>
    %18 = vector.extract_strided_slice %7 {offsets = [0, 2], sizes = [8, 1], strides = [1, 1]} : vector<8x128xi32> to vector<8x1xi32>
    %19 = vector.broadcast %18 : vector<8x1xi32> to vector<8x128xi32>
    %20 = arith.cmpi eq, %19, %3 : vector<8x128xi32>
    %21 = arith.extui %20 : vector<8x128xi1> to vector<8x128xi32>
    %22 = arith.addi %17, %21 : vector<8x128xi32>
    %23 = vector.extract_strided_slice %7 {offsets = [0, 3], sizes = [8, 1], strides = [1, 1]} : vector<8x128xi32> to vector<8x1xi32>
    %24 = vector.broadcast %23 : vector<8x1xi32> to vector<8x128xi32>
    %25 = arith.cmpi eq, %24, %3 : vector<8x128xi32>
    %26 = arith.extui %25 : vector<8x128xi1> to vector<8x128xi32>
    %27 = arith.addi %22, %26 : vector<8x128xi32>
    %28 = vector.extract_strided_slice %7 {offsets = [0, 4], sizes = [8, 1], strides = [1, 1]} : vector<8x128xi32> to vector<8x1xi32>
    %29 = vector.broadcast %28 : vector<8x1xi32> to vector<8x128xi32>
    %30 = arith.cmpi eq, %29, %3 : vector<8x128xi32>
    %31 = arith.extui %30 : vector<8x128xi1> to vector<8x128xi32>
    %32 = arith.addi %27, %31 : vector<8x128xi32>
    %33 = vector.extract_strided_slice %7 {offsets = [0, 5], sizes = [8, 1], strides = [1, 1]} : vector<8x128xi32> to vector<8x1xi32>
    %34 = vector.broadcast %33 : vector<8x1xi32> to vector<8x128xi32>
    %35 = arith.cmpi eq, %34, %3 : vector<8x128xi32>
    %36 = arith.extui %35 : vector<8x128xi1> to vector<8x128xi32>
    %37 = arith.addi %32, %36 : vector<8x128xi32>
    %38 = vector.extract_strided_slice %7 {offsets = [0, 6], sizes = [8, 1], strides = [1, 1]} : vector<8x128xi32> to vector<8x1xi32>
    %39 = vector.broadcast %38 : vector<8x1xi32> to vector<8x128xi32>
    %40 = arith.cmpi eq, %39, %3 : vector<8x128xi32>
    %41 = arith.extui %40 : vector<8x128xi1> to vector<8x128xi32>
    %42 = arith.addi %37, %41 : vector<8x128xi32>
    %43 = vector.extract_strided_slice %7 {offsets = [0, 7], sizes = [8, 1], strides = [1, 1]} : vector<8x128xi32> to vector<8x1xi32>
    %44 = vector.broadcast %43 : vector<8x1xi32> to vector<8x128xi32>
    %45 = arith.cmpi eq, %44, %3 : vector<8x128xi32>
    %46 = arith.extui %45 : vector<8x128xi1> to vector<8x128xi32>
    %47 = arith.addi %42, %46 : vector<8x128xi32>
    %48 = vector.extract_strided_slice %7 {offsets = [0, 8], sizes = [8, 1], strides = [1, 1]} : vector<8x128xi32> to vector<8x1xi32>
    %49 = vector.broadcast %48 : vector<8x1xi32> to vector<8x128xi32>
    %50 = arith.cmpi eq, %49, %3 : vector<8x128xi32>
    %51 = arith.extui %50 : vector<8x128xi1> to vector<8x128xi32>
    %52 = arith.addi %47, %51 : vector<8x128xi32>
    %53 = vector.extract_strided_slice %7 {offsets = [0, 9], sizes = [8, 1], strides = [1, 1]} : vector<8x128xi32> to vector<8x1xi32>
    %54 = vector.broadcast %53 : vector<8x1xi32> to vector<8x128xi32>
    %55 = arith.cmpi eq, %54, %3 : vector<8x128xi32>
    %56 = arith.extui %55 : vector<8x128xi1> to vector<8x128xi32>
    %57 = arith.addi %52, %56 : vector<8x128xi32>
    %58 = vector.extract_strided_slice %7 {offsets = [0, 10], sizes = [8, 1], strides = [1, 1]} : vector<8x128xi32> to vector<8x1xi32>
    %59 = vector.broadcast %58 : vector<8x1xi32> to vector<8x128xi32>
    %60 = arith.cmpi eq, %59, %3 : vector<8x128xi32>
    %61 = arith.extui %60 : vector<8x128xi1> to vector<8x128xi32>
    %62 = arith.addi %57, %61 : vector<8x128xi32>
    %63 = vector.extract_strided_slice %7 {offsets = [0, 11], sizes = [8, 1], strides = [1, 1]} : vector<8x128xi32> to vector<8x1xi32>
    %64 = vector.broadcast %63 : vector<8x1xi32> to vector<8x128xi32>
    %65 = arith.cmpi eq, %64, %3 : vector<8x128xi32>
    %66 = arith.extui %65 : vector<8x128xi1> to vector<8x128xi32>
    %67 = arith.addi %62, %66 : vector<8x128xi32>
    %68 = vector.extract_strided_slice %7 {offsets = [0, 12], sizes = [8, 1], strides = [1, 1]} : vector<8x128xi32> to vector<8x1xi32>
    %69 = vector.broadcast %68 : vector<8x1xi32> to vector<8x128xi32>
    %70 = arith.cmpi eq, %69, %3 : vector<8x128xi32>
    %71 = arith.extui %70 : vector<8x128xi1> to vector<8x128xi32>
    %72 = arith.addi %67, %71 : vector<8x128xi32>
    %73 = vector.extract_strided_slice %7 {offsets = [0, 13], sizes = [8, 1], strides = [1, 1]} : vector<8x128xi32> to vector<8x1xi32>
    %74 = vector.broadcast %73 : vector<8x1xi32> to vector<8x128xi32>
    %75 = arith.cmpi eq, %74, %3 : vector<8x128xi32>
    %76 = arith.extui %75 : vector<8x128xi1> to vector<8x128xi32>
    %77 = arith.addi %72, %76 : vector<8x128xi32>
    %78 = vector.extract_strided_slice %7 {offsets = [0, 14], sizes = [8, 1], strides = [1, 1]} : vector<8x128xi32> to vector<8x1xi32>
    %79 = vector.broadcast %78 : vector<8x1xi32> to vector<8x128xi32>
    %80 = arith.cmpi eq, %79, %3 : vector<8x128xi32>
    %81 = arith.extui %80 : vector<8x128xi1> to vector<8x128xi32>
    %82 = arith.addi %77, %81 : vector<8x128xi32>
    %83 = vector.extract_strided_slice %7 {offsets = [0, 15], sizes = [8, 1], strides = [1, 1]} : vector<8x128xi32> to vector<8x1xi32>
    %84 = vector.broadcast %83 : vector<8x1xi32> to vector<8x128xi32>
    %85 = arith.cmpi eq, %84, %3 : vector<8x128xi32>
    %86 = arith.extui %85 : vector<8x128xi1> to vector<8x128xi32>
    %87 = arith.addi %82, %86 : vector<8x128xi32>
    %88 = vector.extract_strided_slice %7 {offsets = [0, 16], sizes = [8, 1], strides = [1, 1]} : vector<8x128xi32> to vector<8x1xi32>
    %89 = vector.broadcast %88 : vector<8x1xi32> to vector<8x128xi32>
    %90 = arith.cmpi eq, %89, %3 : vector<8x128xi32>
    %91 = arith.extui %90 : vector<8x128xi1> to vector<8x128xi32>
    %92 = arith.addi %87, %91 : vector<8x128xi32>
    %93 = vector.extract_strided_slice %7 {offsets = [0, 17], sizes = [8, 1], strides = [1, 1]} : vector<8x128xi32> to vector<8x1xi32>
    %94 = vector.broadcast %93 : vector<8x1xi32> to vector<8x128xi32>
    %95 = arith.cmpi eq, %94, %3 : vector<8x128xi32>
    %96 = arith.extui %95 : vector<8x128xi1> to vector<8x128xi32>
    %97 = arith.addi %92, %96 : vector<8x128xi32>
    %98 = vector.extract_strided_slice %7 {offsets = [0, 18], sizes = [8, 1], strides = [1, 1]} : vector<8x128xi32> to vector<8x1xi32>
    %99 = vector.broadcast %98 : vector<8x1xi32> to vector<8x128xi32>
    %100 = arith.cmpi eq, %99, %3 : vector<8x128xi32>
    %101 = arith.extui %100 : vector<8x128xi1> to vector<8x128xi32>
    %102 = arith.addi %97, %101 : vector<8x128xi32>
    %103 = vector.extract_strided_slice %7 {offsets = [0, 19], sizes = [8, 1], strides = [1, 1]} : vector<8x128xi32> to vector<8x1xi32>
    %104 = vector.broadcast %103 : vector<8x1xi32> to vector<8x128xi32>
    %105 = arith.cmpi eq, %104, %3 : vector<8x128xi32>
    %106 = arith.extui %105 : vector<8x128xi1> to vector<8x128xi32>
    %107 = arith.addi %102, %106 : vector<8x128xi32>
    %108 = vector.extract_strided_slice %7 {offsets = [0, 20], sizes = [8, 1], strides = [1, 1]} : vector<8x128xi32> to vector<8x1xi32>
    %109 = vector.broadcast %108 : vector<8x1xi32> to vector<8x128xi32>
    %110 = arith.cmpi eq, %109, %3 : vector<8x128xi32>
    %111 = arith.extui %110 : vector<8x128xi1> to vector<8x128xi32>
    %112 = arith.addi %107, %111 : vector<8x128xi32>
    %113 = vector.extract_strided_slice %7 {offsets = [0, 21], sizes = [8, 1], strides = [1, 1]} : vector<8x128xi32> to vector<8x1xi32>
    %114 = vector.broadcast %113 : vector<8x1xi32> to vector<8x128xi32>
    %115 = arith.cmpi eq, %114, %3 : vector<8x128xi32>
    %116 = arith.extui %115 : vector<8x128xi1> to vector<8x128xi32>
    %117 = arith.addi %112, %116 : vector<8x128xi32>
    %118 = vector.extract_strided_slice %7 {offsets = [0, 22], sizes = [8, 1], strides = [1, 1]} : vector<8x128xi32> to vector<8x1xi32>
    %119 = vector.broadcast %118 : vector<8x1xi32> to vector<8x128xi32>
    %120 = arith.cmpi eq, %119, %3 : vector<8x128xi32>
    %121 = arith.extui %120 : vector<8x128xi1> to vector<8x128xi32>
    %122 = arith.addi %117, %121 : vector<8x128xi32>
    %123 = vector.extract_strided_slice %7 {offsets = [0, 23], sizes = [8, 1], strides = [1, 1]} : vector<8x128xi32> to vector<8x1xi32>
    %124 = vector.broadcast %123 : vector<8x1xi32> to vector<8x128xi32>
    %125 = arith.cmpi eq, %124, %3 : vector<8x128xi32>
    %126 = arith.extui %125 : vector<8x128xi1> to vector<8x128xi32>
    %127 = arith.addi %122, %126 : vector<8x128xi32>
    %128 = vector.extract_strided_slice %7 {offsets = [0, 24], sizes = [8, 1], strides = [1, 1]} : vector<8x128xi32> to vector<8x1xi32>
    %129 = vector.broadcast %128 : vector<8x1xi32> to vector<8x128xi32>
    %130 = arith.cmpi eq, %129, %3 : vector<8x128xi32>
    %131 = arith.extui %130 : vector<8x128xi1> to vector<8x128xi32>
    %132 = arith.addi %127, %131 : vector<8x128xi32>
    %133 = vector.extract_strided_slice %7 {offsets = [0, 25], sizes = [8, 1], strides = [1, 1]} : vector<8x128xi32> to vector<8x1xi32>
    %134 = vector.broadcast %133 : vector<8x1xi32> to vector<8x128xi32>
    %135 = arith.cmpi eq, %134, %3 : vector<8x128xi32>
    %136 = arith.extui %135 : vector<8x128xi1> to vector<8x128xi32>
    %137 = arith.addi %132, %136 : vector<8x128xi32>
    %138 = vector.extract_strided_slice %7 {offsets = [0, 26], sizes = [8, 1], strides = [1, 1]} : vector<8x128xi32> to vector<8x1xi32>
    %139 = vector.broadcast %138 : vector<8x1xi32> to vector<8x128xi32>
    %140 = arith.cmpi eq, %139, %3 : vector<8x128xi32>
    %141 = arith.extui %140 : vector<8x128xi1> to vector<8x128xi32>
    %142 = arith.addi %137, %141 : vector<8x128xi32>
    %143 = vector.extract_strided_slice %7 {offsets = [0, 27], sizes = [8, 1], strides = [1, 1]} : vector<8x128xi32> to vector<8x1xi32>
    %144 = vector.broadcast %143 : vector<8x1xi32> to vector<8x128xi32>
    %145 = arith.cmpi eq, %144, %3 : vector<8x128xi32>
    %146 = arith.extui %145 : vector<8x128xi1> to vector<8x128xi32>
    %147 = arith.addi %142, %146 : vector<8x128xi32>
    %148 = vector.extract_strided_slice %7 {offsets = [0, 28], sizes = [8, 1], strides = [1, 1]} : vector<8x128xi32> to vector<8x1xi32>
    %149 = vector.broadcast %148 : vector<8x1xi32> to vector<8x128xi32>
    %150 = arith.cmpi eq, %149, %3 : vector<8x128xi32>
    %151 = arith.extui %150 : vector<8x128xi1> to vector<8x128xi32>
    %152 = arith.addi %147, %151 : vector<8x128xi32>
    %153 = vector.extract_strided_slice %7 {offsets = [0, 29], sizes = [8, 1], strides = [1, 1]} : vector<8x128xi32> to vector<8x1xi32>
    %154 = vector.broadcast %153 : vector<8x1xi32> to vector<8x128xi32>
    %155 = arith.cmpi eq, %154, %3 : vector<8x128xi32>
    %156 = arith.extui %155 : vector<8x128xi1> to vector<8x128xi32>
    %157 = arith.addi %152, %156 : vector<8x128xi32>
    %158 = vector.extract_strided_slice %7 {offsets = [0, 30], sizes = [8, 1], strides = [1, 1]} : vector<8x128xi32> to vector<8x1xi32>
    %159 = vector.broadcast %158 : vector<8x1xi32> to vector<8x128xi32>
    %160 = arith.cmpi eq, %159, %3 : vector<8x128xi32>
    %161 = arith.extui %160 : vector<8x128xi1> to vector<8x128xi32>
    %162 = arith.addi %157, %161 : vector<8x128xi32>
    %163 = vector.extract_strided_slice %7 {offsets = [0, 31], sizes = [8, 1], strides = [1, 1]} : vector<8x128xi32> to vector<8x1xi32>
    %164 = vector.broadcast %163 : vector<8x1xi32> to vector<8x128xi32>
    %165 = arith.cmpi eq, %164, %3 : vector<8x128xi32>
    %166 = arith.extui %165 : vector<8x128xi1> to vector<8x128xi32>
    %167 = arith.addi %162, %166 : vector<8x128xi32>
    %168 = vector.extract_strided_slice %7 {offsets = [0, 32], sizes = [8, 1], strides = [1, 1]} : vector<8x128xi32> to vector<8x1xi32>
    %169 = vector.broadcast %168 : vector<8x1xi32> to vector<8x128xi32>
    %170 = arith.cmpi eq, %169, %3 : vector<8x128xi32>
    %171 = arith.extui %170 : vector<8x128xi1> to vector<8x128xi32>
    %172 = arith.addi %167, %171 : vector<8x128xi32>
    %173 = vector.extract_strided_slice %7 {offsets = [0, 33], sizes = [8, 1], strides = [1, 1]} : vector<8x128xi32> to vector<8x1xi32>
    %174 = vector.broadcast %173 : vector<8x1xi32> to vector<8x128xi32>
    %175 = arith.cmpi eq, %174, %3 : vector<8x128xi32>
    %176 = arith.extui %175 : vector<8x128xi1> to vector<8x128xi32>
    %177 = arith.addi %172, %176 : vector<8x128xi32>
    %178 = vector.extract_strided_slice %7 {offsets = [0, 34], sizes = [8, 1], strides = [1, 1]} : vector<8x128xi32> to vector<8x1xi32>
    %179 = vector.broadcast %178 : vector<8x1xi32> to vector<8x128xi32>
    %180 = arith.cmpi eq, %179, %3 : vector<8x128xi32>
    %181 = arith.extui %180 : vector<8x128xi1> to vector<8x128xi32>
    %182 = arith.addi %177, %181 : vector<8x128xi32>
    %183 = vector.extract_strided_slice %7 {offsets = [0, 35], sizes = [8, 1], strides = [1, 1]} : vector<8x128xi32> to vector<8x1xi32>
    %184 = vector.broadcast %183 : vector<8x1xi32> to vector<8x128xi32>
    %185 = arith.cmpi eq, %184, %3 : vector<8x128xi32>
    %186 = arith.extui %185 : vector<8x128xi1> to vector<8x128xi32>
    %187 = arith.addi %182, %186 : vector<8x128xi32>
    %188 = vector.extract_strided_slice %7 {offsets = [0, 36], sizes = [8, 1], strides = [1, 1]} : vector<8x128xi32> to vector<8x1xi32>
    %189 = vector.broadcast %188 : vector<8x1xi32> to vector<8x128xi32>
    %190 = arith.cmpi eq, %189, %3 : vector<8x128xi32>
    %191 = arith.extui %190 : vector<8x128xi1> to vector<8x128xi32>
    %192 = arith.addi %187, %191 : vector<8x128xi32>
    %193 = vector.extract_strided_slice %7 {offsets = [0, 37], sizes = [8, 1], strides = [1, 1]} : vector<8x128xi32> to vector<8x1xi32>
    %194 = vector.broadcast %193 : vector<8x1xi32> to vector<8x128xi32>
    %195 = arith.cmpi eq, %194, %3 : vector<8x128xi32>
    %196 = arith.extui %195 : vector<8x128xi1> to vector<8x128xi32>
    %197 = arith.addi %192, %196 : vector<8x128xi32>
    %198 = vector.extract_strided_slice %7 {offsets = [0, 38], sizes = [8, 1], strides = [1, 1]} : vector<8x128xi32> to vector<8x1xi32>
    %199 = vector.broadcast %198 : vector<8x1xi32> to vector<8x128xi32>
    %200 = arith.cmpi eq, %199, %3 : vector<8x128xi32>
    %201 = arith.extui %200 : vector<8x128xi1> to vector<8x128xi32>
    %202 = arith.addi %197, %201 : vector<8x128xi32>
    %203 = vector.extract_strided_slice %7 {offsets = [0, 39], sizes = [8, 1], strides = [1, 1]} : vector<8x128xi32> to vector<8x1xi32>
    %204 = vector.broadcast %203 : vector<8x1xi32> to vector<8x128xi32>
    %205 = arith.cmpi eq, %204, %3 : vector<8x128xi32>
    %206 = arith.extui %205 : vector<8x128xi1> to vector<8x128xi32>
    %207 = arith.addi %202, %206 : vector<8x128xi32>
    %208 = vector.extract_strided_slice %7 {offsets = [0, 40], sizes = [8, 1], strides = [1, 1]} : vector<8x128xi32> to vector<8x1xi32>
    %209 = vector.broadcast %208 : vector<8x1xi32> to vector<8x128xi32>
    %210 = arith.cmpi eq, %209, %3 : vector<8x128xi32>
    %211 = arith.extui %210 : vector<8x128xi1> to vector<8x128xi32>
    %212 = arith.addi %207, %211 : vector<8x128xi32>
    %213 = vector.extract_strided_slice %7 {offsets = [0, 41], sizes = [8, 1], strides = [1, 1]} : vector<8x128xi32> to vector<8x1xi32>
    %214 = vector.broadcast %213 : vector<8x1xi32> to vector<8x128xi32>
    %215 = arith.cmpi eq, %214, %3 : vector<8x128xi32>
    %216 = arith.extui %215 : vector<8x128xi1> to vector<8x128xi32>
    %217 = arith.addi %212, %216 : vector<8x128xi32>
    %218 = vector.extract_strided_slice %7 {offsets = [0, 42], sizes = [8, 1], strides = [1, 1]} : vector<8x128xi32> to vector<8x1xi32>
    %219 = vector.broadcast %218 : vector<8x1xi32> to vector<8x128xi32>
    %220 = arith.cmpi eq, %219, %3 : vector<8x128xi32>
    %221 = arith.extui %220 : vector<8x128xi1> to vector<8x128xi32>
    %222 = arith.addi %217, %221 : vector<8x128xi32>
    %223 = vector.extract_strided_slice %7 {offsets = [0, 43], sizes = [8, 1], strides = [1, 1]} : vector<8x128xi32> to vector<8x1xi32>
    %224 = vector.broadcast %223 : vector<8x1xi32> to vector<8x128xi32>
    %225 = arith.cmpi eq, %224, %3 : vector<8x128xi32>
    %226 = arith.extui %225 : vector<8x128xi1> to vector<8x128xi32>
    %227 = arith.addi %222, %226 : vector<8x128xi32>
    %228 = vector.extract_strided_slice %7 {offsets = [0, 44], sizes = [8, 1], strides = [1, 1]} : vector<8x128xi32> to vector<8x1xi32>
    %229 = vector.broadcast %228 : vector<8x1xi32> to vector<8x128xi32>
    %230 = arith.cmpi eq, %229, %3 : vector<8x128xi32>
    %231 = arith.extui %230 : vector<8x128xi1> to vector<8x128xi32>
    %232 = arith.addi %227, %231 : vector<8x128xi32>
    %233 = vector.extract_strided_slice %7 {offsets = [0, 45], sizes = [8, 1], strides = [1, 1]} : vector<8x128xi32> to vector<8x1xi32>
    %234 = vector.broadcast %233 : vector<8x1xi32> to vector<8x128xi32>
    %235 = arith.cmpi eq, %234, %3 : vector<8x128xi32>
    %236 = arith.extui %235 : vector<8x128xi1> to vector<8x128xi32>
    %237 = arith.addi %232, %236 : vector<8x128xi32>
    %238 = vector.extract_strided_slice %7 {offsets = [0, 46], sizes = [8, 1], strides = [1, 1]} : vector<8x128xi32> to vector<8x1xi32>
    %239 = vector.broadcast %238 : vector<8x1xi32> to vector<8x128xi32>
    %240 = arith.cmpi eq, %239, %3 : vector<8x128xi32>
    %241 = arith.extui %240 : vector<8x128xi1> to vector<8x128xi32>
    %242 = arith.addi %237, %241 : vector<8x128xi32>
    %243 = vector.extract_strided_slice %7 {offsets = [0, 47], sizes = [8, 1], strides = [1, 1]} : vector<8x128xi32> to vector<8x1xi32>
    %244 = vector.broadcast %243 : vector<8x1xi32> to vector<8x128xi32>
    %245 = arith.cmpi eq, %244, %3 : vector<8x128xi32>
    %246 = arith.extui %245 : vector<8x128xi1> to vector<8x128xi32>
    %247 = arith.addi %242, %246 : vector<8x128xi32>
    %248 = vector.extract_strided_slice %7 {offsets = [0, 48], sizes = [8, 1], strides = [1, 1]} : vector<8x128xi32> to vector<8x1xi32>
    %249 = vector.broadcast %248 : vector<8x1xi32> to vector<8x128xi32>
    %250 = arith.cmpi eq, %249, %3 : vector<8x128xi32>
    %251 = arith.extui %250 : vector<8x128xi1> to vector<8x128xi32>
    %252 = arith.addi %247, %251 : vector<8x128xi32>
    %253 = vector.extract_strided_slice %7 {offsets = [0, 49], sizes = [8, 1], strides = [1, 1]} : vector<8x128xi32> to vector<8x1xi32>
    %254 = vector.broadcast %253 : vector<8x1xi32> to vector<8x128xi32>
    %255 = arith.cmpi eq, %254, %3 : vector<8x128xi32>
    %256 = arith.extui %255 : vector<8x128xi1> to vector<8x128xi32>
    %257 = arith.addi %252, %256 : vector<8x128xi32>
    %258 = vector.extract_strided_slice %7 {offsets = [0, 50], sizes = [8, 1], strides = [1, 1]} : vector<8x128xi32> to vector<8x1xi32>
    %259 = vector.broadcast %258 : vector<8x1xi32> to vector<8x128xi32>
    %260 = arith.cmpi eq, %259, %3 : vector<8x128xi32>
    %261 = arith.extui %260 : vector<8x128xi1> to vector<8x128xi32>
    %262 = arith.addi %257, %261 : vector<8x128xi32>
    %263 = vector.extract_strided_slice %7 {offsets = [0, 51], sizes = [8, 1], strides = [1, 1]} : vector<8x128xi32> to vector<8x1xi32>
    %264 = vector.broadcast %263 : vector<8x1xi32> to vector<8x128xi32>
    %265 = arith.cmpi eq, %264, %3 : vector<8x128xi32>
    %266 = arith.extui %265 : vector<8x128xi1> to vector<8x128xi32>
    %267 = arith.addi %262, %266 : vector<8x128xi32>
    %268 = vector.extract_strided_slice %7 {offsets = [0, 52], sizes = [8, 1], strides = [1, 1]} : vector<8x128xi32> to vector<8x1xi32>
    %269 = vector.broadcast %268 : vector<8x1xi32> to vector<8x128xi32>
    %270 = arith.cmpi eq, %269, %3 : vector<8x128xi32>
    %271 = arith.extui %270 : vector<8x128xi1> to vector<8x128xi32>
    %272 = arith.addi %267, %271 : vector<8x128xi32>
    %273 = vector.extract_strided_slice %7 {offsets = [0, 53], sizes = [8, 1], strides = [1, 1]} : vector<8x128xi32> to vector<8x1xi32>
    %274 = vector.broadcast %273 : vector<8x1xi32> to vector<8x128xi32>
    %275 = arith.cmpi eq, %274, %3 : vector<8x128xi32>
    %276 = arith.extui %275 : vector<8x128xi1> to vector<8x128xi32>
    %277 = arith.addi %272, %276 : vector<8x128xi32>
    %278 = vector.extract_strided_slice %7 {offsets = [0, 54], sizes = [8, 1], strides = [1, 1]} : vector<8x128xi32> to vector<8x1xi32>
    %279 = vector.broadcast %278 : vector<8x1xi32> to vector<8x128xi32>
    %280 = arith.cmpi eq, %279, %3 : vector<8x128xi32>
    %281 = arith.extui %280 : vector<8x128xi1> to vector<8x128xi32>
    %282 = arith.addi %277, %281 : vector<8x128xi32>
    %283 = vector.extract_strided_slice %7 {offsets = [0, 55], sizes = [8, 1], strides = [1, 1]} : vector<8x128xi32> to vector<8x1xi32>
    %284 = vector.broadcast %283 : vector<8x1xi32> to vector<8x128xi32>
    %285 = arith.cmpi eq, %284, %3 : vector<8x128xi32>
    %286 = arith.extui %285 : vector<8x128xi1> to vector<8x128xi32>
    %287 = arith.addi %282, %286 : vector<8x128xi32>
    %288 = vector.extract_strided_slice %7 {offsets = [0, 56], sizes = [8, 1], strides = [1, 1]} : vector<8x128xi32> to vector<8x1xi32>
    %289 = vector.broadcast %288 : vector<8x1xi32> to vector<8x128xi32>
    %290 = arith.cmpi eq, %289, %3 : vector<8x128xi32>
    %291 = arith.extui %290 : vector<8x128xi1> to vector<8x128xi32>
    %292 = arith.addi %287, %291 : vector<8x128xi32>
    %293 = vector.extract_strided_slice %7 {offsets = [0, 57], sizes = [8, 1], strides = [1, 1]} : vector<8x128xi32> to vector<8x1xi32>
    %294 = vector.broadcast %293 : vector<8x1xi32> to vector<8x128xi32>
    %295 = arith.cmpi eq, %294, %3 : vector<8x128xi32>
    %296 = arith.extui %295 : vector<8x128xi1> to vector<8x128xi32>
    %297 = arith.addi %292, %296 : vector<8x128xi32>
    %298 = vector.extract_strided_slice %7 {offsets = [0, 58], sizes = [8, 1], strides = [1, 1]} : vector<8x128xi32> to vector<8x1xi32>
    %299 = vector.broadcast %298 : vector<8x1xi32> to vector<8x128xi32>
    %300 = arith.cmpi eq, %299, %3 : vector<8x128xi32>
    %301 = arith.extui %300 : vector<8x128xi1> to vector<8x128xi32>
    %302 = arith.addi %297, %301 : vector<8x128xi32>
    %303 = vector.extract_strided_slice %7 {offsets = [0, 59], sizes = [8, 1], strides = [1, 1]} : vector<8x128xi32> to vector<8x1xi32>
    %304 = vector.broadcast %303 : vector<8x1xi32> to vector<8x128xi32>
    %305 = arith.cmpi eq, %304, %3 : vector<8x128xi32>
    %306 = arith.extui %305 : vector<8x128xi1> to vector<8x128xi32>
    %307 = arith.addi %302, %306 : vector<8x128xi32>
    %308 = vector.extract_strided_slice %7 {offsets = [0, 60], sizes = [8, 1], strides = [1, 1]} : vector<8x128xi32> to vector<8x1xi32>
    %309 = vector.broadcast %308 : vector<8x1xi32> to vector<8x128xi32>
    %310 = arith.cmpi eq, %309, %3 : vector<8x128xi32>
    %311 = arith.extui %310 : vector<8x128xi1> to vector<8x128xi32>
    %312 = arith.addi %307, %311 : vector<8x128xi32>
    %313 = vector.extract_strided_slice %7 {offsets = [0, 61], sizes = [8, 1], strides = [1, 1]} : vector<8x128xi32> to vector<8x1xi32>
    %314 = vector.broadcast %313 : vector<8x1xi32> to vector<8x128xi32>
    %315 = arith.cmpi eq, %314, %3 : vector<8x128xi32>
    %316 = arith.extui %315 : vector<8x128xi1> to vector<8x128xi32>
    %317 = arith.addi %312, %316 : vector<8x128xi32>
    %318 = vector.extract_strided_slice %7 {offsets = [0, 62], sizes = [8, 1], strides = [1, 1]} : vector<8x128xi32> to vector<8x1xi32>
    %319 = vector.broadcast %318 : vector<8x1xi32> to vector<8x128xi32>
    %320 = arith.cmpi eq, %319, %3 : vector<8x128xi32>
    %321 = arith.extui %320 : vector<8x128xi1> to vector<8x128xi32>
    %322 = arith.addi %317, %321 : vector<8x128xi32>
    %323 = vector.extract_strided_slice %7 {offsets = [0, 63], sizes = [8, 1], strides = [1, 1]} : vector<8x128xi32> to vector<8x1xi32>
    %324 = vector.broadcast %323 : vector<8x1xi32> to vector<8x128xi32>
    %325 = arith.cmpi eq, %324, %3 : vector<8x128xi32>
    %326 = arith.extui %325 : vector<8x128xi1> to vector<8x128xi32>
    %327 = arith.addi %322, %326 : vector<8x128xi32>
    %328 = vector.extract_strided_slice %7 {offsets = [0, 64], sizes = [8, 1], strides = [1, 1]} : vector<8x128xi32> to vector<8x1xi32>
    %329 = vector.broadcast %328 : vector<8x1xi32> to vector<8x128xi32>
    %330 = arith.cmpi eq, %329, %3 : vector<8x128xi32>
    %331 = arith.extui %330 : vector<8x128xi1> to vector<8x128xi32>
    %332 = arith.addi %327, %331 : vector<8x128xi32>
    %333 = vector.extract_strided_slice %7 {offsets = [0, 65], sizes = [8, 1], strides = [1, 1]} : vector<8x128xi32> to vector<8x1xi32>
    %334 = vector.broadcast %333 : vector<8x1xi32> to vector<8x128xi32>
    %335 = arith.cmpi eq, %334, %3 : vector<8x128xi32>
    %336 = arith.extui %335 : vector<8x128xi1> to vector<8x128xi32>
    %337 = arith.addi %332, %336 : vector<8x128xi32>
    %338 = vector.extract_strided_slice %7 {offsets = [0, 66], sizes = [8, 1], strides = [1, 1]} : vector<8x128xi32> to vector<8x1xi32>
    %339 = vector.broadcast %338 : vector<8x1xi32> to vector<8x128xi32>
    %340 = arith.cmpi eq, %339, %3 : vector<8x128xi32>
    %341 = arith.extui %340 : vector<8x128xi1> to vector<8x128xi32>
    %342 = arith.addi %337, %341 : vector<8x128xi32>
    %343 = vector.extract_strided_slice %7 {offsets = [0, 67], sizes = [8, 1], strides = [1, 1]} : vector<8x128xi32> to vector<8x1xi32>
    %344 = vector.broadcast %343 : vector<8x1xi32> to vector<8x128xi32>
    %345 = arith.cmpi eq, %344, %3 : vector<8x128xi32>
    %346 = arith.extui %345 : vector<8x128xi1> to vector<8x128xi32>
    %347 = arith.addi %342, %346 : vector<8x128xi32>
    %348 = vector.extract_strided_slice %7 {offsets = [0, 68], sizes = [8, 1], strides = [1, 1]} : vector<8x128xi32> to vector<8x1xi32>
    %349 = vector.broadcast %348 : vector<8x1xi32> to vector<8x128xi32>
    %350 = arith.cmpi eq, %349, %3 : vector<8x128xi32>
    %351 = arith.extui %350 : vector<8x128xi1> to vector<8x128xi32>
    %352 = arith.addi %347, %351 : vector<8x128xi32>
    %353 = vector.extract_strided_slice %7 {offsets = [0, 69], sizes = [8, 1], strides = [1, 1]} : vector<8x128xi32> to vector<8x1xi32>
    %354 = vector.broadcast %353 : vector<8x1xi32> to vector<8x128xi32>
    %355 = arith.cmpi eq, %354, %3 : vector<8x128xi32>
    %356 = arith.extui %355 : vector<8x128xi1> to vector<8x128xi32>
    %357 = arith.addi %352, %356 : vector<8x128xi32>
    %358 = vector.extract_strided_slice %7 {offsets = [0, 70], sizes = [8, 1], strides = [1, 1]} : vector<8x128xi32> to vector<8x1xi32>
    %359 = vector.broadcast %358 : vector<8x1xi32> to vector<8x128xi32>
    %360 = arith.cmpi eq, %359, %3 : vector<8x128xi32>
    %361 = arith.extui %360 : vector<8x128xi1> to vector<8x128xi32>
    %362 = arith.addi %357, %361 : vector<8x128xi32>
    %363 = vector.extract_strided_slice %7 {offsets = [0, 71], sizes = [8, 1], strides = [1, 1]} : vector<8x128xi32> to vector<8x1xi32>
    %364 = vector.broadcast %363 : vector<8x1xi32> to vector<8x128xi32>
    %365 = arith.cmpi eq, %364, %3 : vector<8x128xi32>
    %366 = arith.extui %365 : vector<8x128xi1> to vector<8x128xi32>
    %367 = arith.addi %362, %366 : vector<8x128xi32>
    %368 = vector.extract_strided_slice %7 {offsets = [0, 72], sizes = [8, 1], strides = [1, 1]} : vector<8x128xi32> to vector<8x1xi32>
    %369 = vector.broadcast %368 : vector<8x1xi32> to vector<8x128xi32>
    %370 = arith.cmpi eq, %369, %3 : vector<8x128xi32>
    %371 = arith.extui %370 : vector<8x128xi1> to vector<8x128xi32>
    %372 = arith.addi %367, %371 : vector<8x128xi32>
    %373 = vector.extract_strided_slice %7 {offsets = [0, 73], sizes = [8, 1], strides = [1, 1]} : vector<8x128xi32> to vector<8x1xi32>
    %374 = vector.broadcast %373 : vector<8x1xi32> to vector<8x128xi32>
    %375 = arith.cmpi eq, %374, %3 : vector<8x128xi32>
    %376 = arith.extui %375 : vector<8x128xi1> to vector<8x128xi32>
    %377 = arith.addi %372, %376 : vector<8x128xi32>
    %378 = vector.extract_strided_slice %7 {offsets = [0, 74], sizes = [8, 1], strides = [1, 1]} : vector<8x128xi32> to vector<8x1xi32>
    %379 = vector.broadcast %378 : vector<8x1xi32> to vector<8x128xi32>
    %380 = arith.cmpi eq, %379, %3 : vector<8x128xi32>
    %381 = arith.extui %380 : vector<8x128xi1> to vector<8x128xi32>
    %382 = arith.addi %377, %381 : vector<8x128xi32>
    %383 = vector.extract_strided_slice %7 {offsets = [0, 75], sizes = [8, 1], strides = [1, 1]} : vector<8x128xi32> to vector<8x1xi32>
    %384 = vector.broadcast %383 : vector<8x1xi32> to vector<8x128xi32>
    %385 = arith.cmpi eq, %384, %3 : vector<8x128xi32>
    %386 = arith.extui %385 : vector<8x128xi1> to vector<8x128xi32>
    %387 = arith.addi %382, %386 : vector<8x128xi32>
    %388 = vector.extract_strided_slice %7 {offsets = [0, 76], sizes = [8, 1], strides = [1, 1]} : vector<8x128xi32> to vector<8x1xi32>
    %389 = vector.broadcast %388 : vector<8x1xi32> to vector<8x128xi32>
    %390 = arith.cmpi eq, %389, %3 : vector<8x128xi32>
    %391 = arith.extui %390 : vector<8x128xi1> to vector<8x128xi32>
    %392 = arith.addi %387, %391 : vector<8x128xi32>
    %393 = vector.extract_strided_slice %7 {offsets = [0, 77], sizes = [8, 1], strides = [1, 1]} : vector<8x128xi32> to vector<8x1xi32>
    %394 = vector.broadcast %393 : vector<8x1xi32> to vector<8x128xi32>
    %395 = arith.cmpi eq, %394, %3 : vector<8x128xi32>
    %396 = arith.extui %395 : vector<8x128xi1> to vector<8x128xi32>
    %397 = arith.addi %392, %396 : vector<8x128xi32>
    %398 = vector.extract_strided_slice %7 {offsets = [0, 78], sizes = [8, 1], strides = [1, 1]} : vector<8x128xi32> to vector<8x1xi32>
    %399 = vector.broadcast %398 : vector<8x1xi32> to vector<8x128xi32>
    %400 = arith.cmpi eq, %399, %3 : vector<8x128xi32>
    %401 = arith.extui %400 : vector<8x128xi1> to vector<8x128xi32>
    %402 = arith.addi %397, %401 : vector<8x128xi32>
    %403 = vector.extract_strided_slice %7 {offsets = [0, 79], sizes = [8, 1], strides = [1, 1]} : vector<8x128xi32> to vector<8x1xi32>
    %404 = vector.broadcast %403 : vector<8x1xi32> to vector<8x128xi32>
    %405 = arith.cmpi eq, %404, %3 : vector<8x128xi32>
    %406 = arith.extui %405 : vector<8x128xi1> to vector<8x128xi32>
    %407 = arith.addi %402, %406 : vector<8x128xi32>
    %408 = vector.extract_strided_slice %7 {offsets = [0, 80], sizes = [8, 1], strides = [1, 1]} : vector<8x128xi32> to vector<8x1xi32>
    %409 = vector.broadcast %408 : vector<8x1xi32> to vector<8x128xi32>
    %410 = arith.cmpi eq, %409, %3 : vector<8x128xi32>
    %411 = arith.extui %410 : vector<8x128xi1> to vector<8x128xi32>
    %412 = arith.addi %407, %411 : vector<8x128xi32>
    %413 = vector.extract_strided_slice %7 {offsets = [0, 81], sizes = [8, 1], strides = [1, 1]} : vector<8x128xi32> to vector<8x1xi32>
    %414 = vector.broadcast %413 : vector<8x1xi32> to vector<8x128xi32>
    %415 = arith.cmpi eq, %414, %3 : vector<8x128xi32>
    %416 = arith.extui %415 : vector<8x128xi1> to vector<8x128xi32>
    %417 = arith.addi %412, %416 : vector<8x128xi32>
    %418 = vector.extract_strided_slice %7 {offsets = [0, 82], sizes = [8, 1], strides = [1, 1]} : vector<8x128xi32> to vector<8x1xi32>
    %419 = vector.broadcast %418 : vector<8x1xi32> to vector<8x128xi32>
    %420 = arith.cmpi eq, %419, %3 : vector<8x128xi32>
    %421 = arith.extui %420 : vector<8x128xi1> to vector<8x128xi32>
    %422 = arith.addi %417, %421 : vector<8x128xi32>
    %423 = vector.extract_strided_slice %7 {offsets = [0, 83], sizes = [8, 1], strides = [1, 1]} : vector<8x128xi32> to vector<8x1xi32>
    %424 = vector.broadcast %423 : vector<8x1xi32> to vector<8x128xi32>
    %425 = arith.cmpi eq, %424, %3 : vector<8x128xi32>
    %426 = arith.extui %425 : vector<8x128xi1> to vector<8x128xi32>
    %427 = arith.addi %422, %426 : vector<8x128xi32>
    %428 = vector.extract_strided_slice %7 {offsets = [0, 84], sizes = [8, 1], strides = [1, 1]} : vector<8x128xi32> to vector<8x1xi32>
    %429 = vector.broadcast %428 : vector<8x1xi32> to vector<8x128xi32>
    %430 = arith.cmpi eq, %429, %3 : vector<8x128xi32>
    %431 = arith.extui %430 : vector<8x128xi1> to vector<8x128xi32>
    %432 = arith.addi %427, %431 : vector<8x128xi32>
    %433 = vector.extract_strided_slice %7 {offsets = [0, 85], sizes = [8, 1], strides = [1, 1]} : vector<8x128xi32> to vector<8x1xi32>
    %434 = vector.broadcast %433 : vector<8x1xi32> to vector<8x128xi32>
    %435 = arith.cmpi eq, %434, %3 : vector<8x128xi32>
    %436 = arith.extui %435 : vector<8x128xi1> to vector<8x128xi32>
    %437 = arith.addi %432, %436 : vector<8x128xi32>
    %438 = vector.extract_strided_slice %7 {offsets = [0, 86], sizes = [8, 1], strides = [1, 1]} : vector<8x128xi32> to vector<8x1xi32>
    %439 = vector.broadcast %438 : vector<8x1xi32> to vector<8x128xi32>
    %440 = arith.cmpi eq, %439, %3 : vector<8x128xi32>
    %441 = arith.extui %440 : vector<8x128xi1> to vector<8x128xi32>
    %442 = arith.addi %437, %441 : vector<8x128xi32>
    %443 = vector.extract_strided_slice %7 {offsets = [0, 87], sizes = [8, 1], strides = [1, 1]} : vector<8x128xi32> to vector<8x1xi32>
    %444 = vector.broadcast %443 : vector<8x1xi32> to vector<8x128xi32>
    %445 = arith.cmpi eq, %444, %3 : vector<8x128xi32>
    %446 = arith.extui %445 : vector<8x128xi1> to vector<8x128xi32>
    %447 = arith.addi %442, %446 : vector<8x128xi32>
    %448 = vector.extract_strided_slice %7 {offsets = [0, 88], sizes = [8, 1], strides = [1, 1]} : vector<8x128xi32> to vector<8x1xi32>
    %449 = vector.broadcast %448 : vector<8x1xi32> to vector<8x128xi32>
    %450 = arith.cmpi eq, %449, %3 : vector<8x128xi32>
    %451 = arith.extui %450 : vector<8x128xi1> to vector<8x128xi32>
    %452 = arith.addi %447, %451 : vector<8x128xi32>
    %453 = vector.extract_strided_slice %7 {offsets = [0, 89], sizes = [8, 1], strides = [1, 1]} : vector<8x128xi32> to vector<8x1xi32>
    %454 = vector.broadcast %453 : vector<8x1xi32> to vector<8x128xi32>
    %455 = arith.cmpi eq, %454, %3 : vector<8x128xi32>
    %456 = arith.extui %455 : vector<8x128xi1> to vector<8x128xi32>
    %457 = arith.addi %452, %456 : vector<8x128xi32>
    %458 = vector.extract_strided_slice %7 {offsets = [0, 90], sizes = [8, 1], strides = [1, 1]} : vector<8x128xi32> to vector<8x1xi32>
    %459 = vector.broadcast %458 : vector<8x1xi32> to vector<8x128xi32>
    %460 = arith.cmpi eq, %459, %3 : vector<8x128xi32>
    %461 = arith.extui %460 : vector<8x128xi1> to vector<8x128xi32>
    %462 = arith.addi %457, %461 : vector<8x128xi32>
    %463 = vector.extract_strided_slice %7 {offsets = [0, 91], sizes = [8, 1], strides = [1, 1]} : vector<8x128xi32> to vector<8x1xi32>
    %464 = vector.broadcast %463 : vector<8x1xi32> to vector<8x128xi32>
    %465 = arith.cmpi eq, %464, %3 : vector<8x128xi32>
    %466 = arith.extui %465 : vector<8x128xi1> to vector<8x128xi32>
    %467 = arith.addi %462, %466 : vector<8x128xi32>
    %468 = vector.extract_strided_slice %7 {offsets = [0, 92], sizes = [8, 1], strides = [1, 1]} : vector<8x128xi32> to vector<8x1xi32>
    %469 = vector.broadcast %468 : vector<8x1xi32> to vector<8x128xi32>
    %470 = arith.cmpi eq, %469, %3 : vector<8x128xi32>
    %471 = arith.extui %470 : vector<8x128xi1> to vector<8x128xi32>
    %472 = arith.addi %467, %471 : vector<8x128xi32>
    %473 = vector.extract_strided_slice %7 {offsets = [0, 93], sizes = [8, 1], strides = [1, 1]} : vector<8x128xi32> to vector<8x1xi32>
    %474 = vector.broadcast %473 : vector<8x1xi32> to vector<8x128xi32>
    %475 = arith.cmpi eq, %474, %3 : vector<8x128xi32>
    %476 = arith.extui %475 : vector<8x128xi1> to vector<8x128xi32>
    %477 = arith.addi %472, %476 : vector<8x128xi32>
    %478 = vector.extract_strided_slice %7 {offsets = [0, 94], sizes = [8, 1], strides = [1, 1]} : vector<8x128xi32> to vector<8x1xi32>
    %479 = vector.broadcast %478 : vector<8x1xi32> to vector<8x128xi32>
    %480 = arith.cmpi eq, %479, %3 : vector<8x128xi32>
    %481 = arith.extui %480 : vector<8x128xi1> to vector<8x128xi32>
    %482 = arith.addi %477, %481 : vector<8x128xi32>
    %483 = vector.extract_strided_slice %7 {offsets = [0, 95], sizes = [8, 1], strides = [1, 1]} : vector<8x128xi32> to vector<8x1xi32>
    %484 = vector.broadcast %483 : vector<8x1xi32> to vector<8x128xi32>
    %485 = arith.cmpi eq, %484, %3 : vector<8x128xi32>
    %486 = arith.extui %485 : vector<8x128xi1> to vector<8x128xi32>
    %487 = arith.addi %482, %486 : vector<8x128xi32>
    %488 = vector.extract_strided_slice %7 {offsets = [0, 96], sizes = [8, 1], strides = [1, 1]} : vector<8x128xi32> to vector<8x1xi32>
    %489 = vector.broadcast %488 : vector<8x1xi32> to vector<8x128xi32>
    %490 = arith.cmpi eq, %489, %3 : vector<8x128xi32>
    %491 = arith.extui %490 : vector<8x128xi1> to vector<8x128xi32>
    %492 = arith.addi %487, %491 : vector<8x128xi32>
    %493 = vector.extract_strided_slice %7 {offsets = [0, 97], sizes = [8, 1], strides = [1, 1]} : vector<8x128xi32> to vector<8x1xi32>
    %494 = vector.broadcast %493 : vector<8x1xi32> to vector<8x128xi32>
    %495 = arith.cmpi eq, %494, %3 : vector<8x128xi32>
    %496 = arith.extui %495 : vector<8x128xi1> to vector<8x128xi32>
    %497 = arith.addi %492, %496 : vector<8x128xi32>
    %498 = vector.extract_strided_slice %7 {offsets = [0, 98], sizes = [8, 1], strides = [1, 1]} : vector<8x128xi32> to vector<8x1xi32>
    %499 = vector.broadcast %498 : vector<8x1xi32> to vector<8x128xi32>
    %500 = arith.cmpi eq, %499, %3 : vector<8x128xi32>
    %501 = arith.extui %500 : vector<8x128xi1> to vector<8x128xi32>
    %502 = arith.addi %497, %501 : vector<8x128xi32>
    %503 = vector.extract_strided_slice %7 {offsets = [0, 99], sizes = [8, 1], strides = [1, 1]} : vector<8x128xi32> to vector<8x1xi32>
    %504 = vector.broadcast %503 : vector<8x1xi32> to vector<8x128xi32>
    %505 = arith.cmpi eq, %504, %3 : vector<8x128xi32>
    %506 = arith.extui %505 : vector<8x128xi1> to vector<8x128xi32>
    %507 = arith.addi %502, %506 : vector<8x128xi32>
    %508 = vector.extract_strided_slice %7 {offsets = [0, 100], sizes = [8, 1], strides = [1, 1]} : vector<8x128xi32> to vector<8x1xi32>
    %509 = vector.broadcast %508 : vector<8x1xi32> to vector<8x128xi32>
    %510 = arith.cmpi eq, %509, %3 : vector<8x128xi32>
    %511 = arith.extui %510 : vector<8x128xi1> to vector<8x128xi32>
    %512 = arith.addi %507, %511 : vector<8x128xi32>
    %513 = vector.extract_strided_slice %7 {offsets = [0, 101], sizes = [8, 1], strides = [1, 1]} : vector<8x128xi32> to vector<8x1xi32>
    %514 = vector.broadcast %513 : vector<8x1xi32> to vector<8x128xi32>
    %515 = arith.cmpi eq, %514, %3 : vector<8x128xi32>
    %516 = arith.extui %515 : vector<8x128xi1> to vector<8x128xi32>
    %517 = arith.addi %512, %516 : vector<8x128xi32>
    %518 = vector.extract_strided_slice %7 {offsets = [0, 102], sizes = [8, 1], strides = [1, 1]} : vector<8x128xi32> to vector<8x1xi32>
    %519 = vector.broadcast %518 : vector<8x1xi32> to vector<8x128xi32>
    %520 = arith.cmpi eq, %519, %3 : vector<8x128xi32>
    %521 = arith.extui %520 : vector<8x128xi1> to vector<8x128xi32>
    %522 = arith.addi %517, %521 : vector<8x128xi32>
    %523 = vector.extract_strided_slice %7 {offsets = [0, 103], sizes = [8, 1], strides = [1, 1]} : vector<8x128xi32> to vector<8x1xi32>
    %524 = vector.broadcast %523 : vector<8x1xi32> to vector<8x128xi32>
    %525 = arith.cmpi eq, %524, %3 : vector<8x128xi32>
    %526 = arith.extui %525 : vector<8x128xi1> to vector<8x128xi32>
    %527 = arith.addi %522, %526 : vector<8x128xi32>
    %528 = vector.extract_strided_slice %7 {offsets = [0, 104], sizes = [8, 1], strides = [1, 1]} : vector<8x128xi32> to vector<8x1xi32>
    %529 = vector.broadcast %528 : vector<8x1xi32> to vector<8x128xi32>
    %530 = arith.cmpi eq, %529, %3 : vector<8x128xi32>
    %531 = arith.extui %530 : vector<8x128xi1> to vector<8x128xi32>
    %532 = arith.addi %527, %531 : vector<8x128xi32>
    %533 = vector.extract_strided_slice %7 {offsets = [0, 105], sizes = [8, 1], strides = [1, 1]} : vector<8x128xi32> to vector<8x1xi32>
    %534 = vector.broadcast %533 : vector<8x1xi32> to vector<8x128xi32>
    %535 = arith.cmpi eq, %534, %3 : vector<8x128xi32>
    %536 = arith.extui %535 : vector<8x128xi1> to vector<8x128xi32>
    %537 = arith.addi %532, %536 : vector<8x128xi32>
    %538 = vector.extract_strided_slice %7 {offsets = [0, 106], sizes = [8, 1], strides = [1, 1]} : vector<8x128xi32> to vector<8x1xi32>
    %539 = vector.broadcast %538 : vector<8x1xi32> to vector<8x128xi32>
    %540 = arith.cmpi eq, %539, %3 : vector<8x128xi32>
    %541 = arith.extui %540 : vector<8x128xi1> to vector<8x128xi32>
    %542 = arith.addi %537, %541 : vector<8x128xi32>
    %543 = vector.extract_strided_slice %7 {offsets = [0, 107], sizes = [8, 1], strides = [1, 1]} : vector<8x128xi32> to vector<8x1xi32>
    %544 = vector.broadcast %543 : vector<8x1xi32> to vector<8x128xi32>
    %545 = arith.cmpi eq, %544, %3 : vector<8x128xi32>
    %546 = arith.extui %545 : vector<8x128xi1> to vector<8x128xi32>
    %547 = arith.addi %542, %546 : vector<8x128xi32>
    %548 = vector.extract_strided_slice %7 {offsets = [0, 108], sizes = [8, 1], strides = [1, 1]} : vector<8x128xi32> to vector<8x1xi32>
    %549 = vector.broadcast %548 : vector<8x1xi32> to vector<8x128xi32>
    %550 = arith.cmpi eq, %549, %3 : vector<8x128xi32>
    %551 = arith.extui %550 : vector<8x128xi1> to vector<8x128xi32>
    %552 = arith.addi %547, %551 : vector<8x128xi32>
    %553 = vector.extract_strided_slice %7 {offsets = [0, 109], sizes = [8, 1], strides = [1, 1]} : vector<8x128xi32> to vector<8x1xi32>
    %554 = vector.broadcast %553 : vector<8x1xi32> to vector<8x128xi32>
    %555 = arith.cmpi eq, %554, %3 : vector<8x128xi32>
    %556 = arith.extui %555 : vector<8x128xi1> to vector<8x128xi32>
    %557 = arith.addi %552, %556 : vector<8x128xi32>
    %558 = vector.extract_strided_slice %7 {offsets = [0, 110], sizes = [8, 1], strides = [1, 1]} : vector<8x128xi32> to vector<8x1xi32>
    %559 = vector.broadcast %558 : vector<8x1xi32> to vector<8x128xi32>
    %560 = arith.cmpi eq, %559, %3 : vector<8x128xi32>
    %561 = arith.extui %560 : vector<8x128xi1> to vector<8x128xi32>
    %562 = arith.addi %557, %561 : vector<8x128xi32>
    %563 = vector.extract_strided_slice %7 {offsets = [0, 111], sizes = [8, 1], strides = [1, 1]} : vector<8x128xi32> to vector<8x1xi32>
    %564 = vector.broadcast %563 : vector<8x1xi32> to vector<8x128xi32>
    %565 = arith.cmpi eq, %564, %3 : vector<8x128xi32>
    %566 = arith.extui %565 : vector<8x128xi1> to vector<8x128xi32>
    %567 = arith.addi %562, %566 : vector<8x128xi32>
    %568 = vector.extract_strided_slice %7 {offsets = [0, 112], sizes = [8, 1], strides = [1, 1]} : vector<8x128xi32> to vector<8x1xi32>
    %569 = vector.broadcast %568 : vector<8x1xi32> to vector<8x128xi32>
    %570 = arith.cmpi eq, %569, %3 : vector<8x128xi32>
    %571 = arith.extui %570 : vector<8x128xi1> to vector<8x128xi32>
    %572 = arith.addi %567, %571 : vector<8x128xi32>
    %573 = vector.extract_strided_slice %7 {offsets = [0, 113], sizes = [8, 1], strides = [1, 1]} : vector<8x128xi32> to vector<8x1xi32>
    %574 = vector.broadcast %573 : vector<8x1xi32> to vector<8x128xi32>
    %575 = arith.cmpi eq, %574, %3 : vector<8x128xi32>
    %576 = arith.extui %575 : vector<8x128xi1> to vector<8x128xi32>
    %577 = arith.addi %572, %576 : vector<8x128xi32>
    %578 = vector.extract_strided_slice %7 {offsets = [0, 114], sizes = [8, 1], strides = [1, 1]} : vector<8x128xi32> to vector<8x1xi32>
    %579 = vector.broadcast %578 : vector<8x1xi32> to vector<8x128xi32>
    %580 = arith.cmpi eq, %579, %3 : vector<8x128xi32>
    %581 = arith.extui %580 : vector<8x128xi1> to vector<8x128xi32>
    %582 = arith.addi %577, %581 : vector<8x128xi32>
    %583 = vector.extract_strided_slice %7 {offsets = [0, 115], sizes = [8, 1], strides = [1, 1]} : vector<8x128xi32> to vector<8x1xi32>
    %584 = vector.broadcast %583 : vector<8x1xi32> to vector<8x128xi32>
    %585 = arith.cmpi eq, %584, %3 : vector<8x128xi32>
    %586 = arith.extui %585 : vector<8x128xi1> to vector<8x128xi32>
    %587 = arith.addi %582, %586 : vector<8x128xi32>
    %588 = vector.extract_strided_slice %7 {offsets = [0, 116], sizes = [8, 1], strides = [1, 1]} : vector<8x128xi32> to vector<8x1xi32>
    %589 = vector.broadcast %588 : vector<8x1xi32> to vector<8x128xi32>
    %590 = arith.cmpi eq, %589, %3 : vector<8x128xi32>
    %591 = arith.extui %590 : vector<8x128xi1> to vector<8x128xi32>
    %592 = arith.addi %587, %591 : vector<8x128xi32>
    %593 = vector.extract_strided_slice %7 {offsets = [0, 117], sizes = [8, 1], strides = [1, 1]} : vector<8x128xi32> to vector<8x1xi32>
    %594 = vector.broadcast %593 : vector<8x1xi32> to vector<8x128xi32>
    %595 = arith.cmpi eq, %594, %3 : vector<8x128xi32>
    %596 = arith.extui %595 : vector<8x128xi1> to vector<8x128xi32>
    %597 = arith.addi %592, %596 : vector<8x128xi32>
    %598 = vector.extract_strided_slice %7 {offsets = [0, 118], sizes = [8, 1], strides = [1, 1]} : vector<8x128xi32> to vector<8x1xi32>
    %599 = vector.broadcast %598 : vector<8x1xi32> to vector<8x128xi32>
    %600 = arith.cmpi eq, %599, %3 : vector<8x128xi32>
    %601 = arith.extui %600 : vector<8x128xi1> to vector<8x128xi32>
    %602 = arith.addi %597, %601 : vector<8x128xi32>
    %603 = vector.extract_strided_slice %7 {offsets = [0, 119], sizes = [8, 1], strides = [1, 1]} : vector<8x128xi32> to vector<8x1xi32>
    %604 = vector.broadcast %603 : vector<8x1xi32> to vector<8x128xi32>
    %605 = arith.cmpi eq, %604, %3 : vector<8x128xi32>
    %606 = arith.extui %605 : vector<8x128xi1> to vector<8x128xi32>
    %607 = arith.addi %602, %606 : vector<8x128xi32>
    %608 = vector.extract_strided_slice %7 {offsets = [0, 120], sizes = [8, 1], strides = [1, 1]} : vector<8x128xi32> to vector<8x1xi32>
    %609 = vector.broadcast %608 : vector<8x1xi32> to vector<8x128xi32>
    %610 = arith.cmpi eq, %609, %3 : vector<8x128xi32>
    %611 = arith.extui %610 : vector<8x128xi1> to vector<8x128xi32>
    %612 = arith.addi %607, %611 : vector<8x128xi32>
    %613 = vector.extract_strided_slice %7 {offsets = [0, 121], sizes = [8, 1], strides = [1, 1]} : vector<8x128xi32> to vector<8x1xi32>
    %614 = vector.broadcast %613 : vector<8x1xi32> to vector<8x128xi32>
    %615 = arith.cmpi eq, %614, %3 : vector<8x128xi32>
    %616 = arith.extui %615 : vector<8x128xi1> to vector<8x128xi32>
    %617 = arith.addi %612, %616 : vector<8x128xi32>
    %618 = vector.extract_strided_slice %7 {offsets = [0, 122], sizes = [8, 1], strides = [1, 1]} : vector<8x128xi32> to vector<8x1xi32>
    %619 = vector.broadcast %618 : vector<8x1xi32> to vector<8x128xi32>
    %620 = arith.cmpi eq, %619, %3 : vector<8x128xi32>
    %621 = arith.extui %620 : vector<8x128xi1> to vector<8x128xi32>
    %622 = arith.addi %617, %621 : vector<8x128xi32>
    %623 = vector.extract_strided_slice %7 {offsets = [0, 123], sizes = [8, 1], strides = [1, 1]} : vector<8x128xi32> to vector<8x1xi32>
    %624 = vector.broadcast %623 : vector<8x1xi32> to vector<8x128xi32>
    %625 = arith.cmpi eq, %624, %3 : vector<8x128xi32>
    %626 = arith.extui %625 : vector<8x128xi1> to vector<8x128xi32>
    %627 = arith.addi %622, %626 : vector<8x128xi32>
    %628 = vector.extract_strided_slice %7 {offsets = [0, 124], sizes = [8, 1], strides = [1, 1]} : vector<8x128xi32> to vector<8x1xi32>
    %629 = vector.broadcast %628 : vector<8x1xi32> to vector<8x128xi32>
    %630 = arith.cmpi eq, %629, %3 : vector<8x128xi32>
    %631 = arith.extui %630 : vector<8x128xi1> to vector<8x128xi32>
    %632 = arith.addi %627, %631 : vector<8x128xi32>
    %633 = vector.extract_strided_slice %7 {offsets = [0, 125], sizes = [8, 1], strides = [1, 1]} : vector<8x128xi32> to vector<8x1xi32>
    %634 = vector.broadcast %633 : vector<8x1xi32> to vector<8x128xi32>
    %635 = arith.cmpi eq, %634, %3 : vector<8x128xi32>
    %636 = arith.extui %635 : vector<8x128xi1> to vector<8x128xi32>
    %637 = arith.addi %632, %636 : vector<8x128xi32>
    %638 = vector.extract_strided_slice %7 {offsets = [0, 126], sizes = [8, 1], strides = [1, 1]} : vector<8x128xi32> to vector<8x1xi32>
    %639 = vector.broadcast %638 : vector<8x1xi32> to vector<8x128xi32>
    %640 = arith.cmpi eq, %639, %3 : vector<8x128xi32>
    %641 = arith.extui %640 : vector<8x128xi1> to vector<8x128xi32>
    %642 = arith.addi %637, %641 : vector<8x128xi32>
    %643 = vector.extract_strided_slice %7 {offsets = [0, 127], sizes = [8, 1], strides = [1, 1]} : vector<8x128xi32> to vector<8x1xi32>
    %644 = vector.broadcast %643 : vector<8x1xi32> to vector<8x128xi32>
    %645 = arith.cmpi eq, %644, %3 : vector<8x128xi32>
    %646 = arith.extui %645 : vector<8x128xi1> to vector<8x128xi32>
    %647 = arith.addi %642, %646 : vector<8x128xi32>
    %c1_i32 = arith.constant 1 : i32
    %648 = arith.sitofp %647 : vector<8x128xi32> to vector<8x128xf32>
    %c0_2 = arith.constant 0 : index
    %c0_3 = arith.constant 0 : index
    %649 = vector.load %arg3[%c0_2, %c0_3] : memref<8x128xf32, #tpu.memory_space<vmem>>, vector<8x128xf32>
    tpu.vector_store %arg3[%c0_2, %c0_3], %648 {strides = array<i32>} : memref<8x128xf32, #tpu.memory_space<vmem>>, vector<8x128xf32>,
    return
  }
  func.func @transform_0(%arg0: i32, %arg1: i32) -> (i32, i32, i32) {
    %c0_i32 = arith.constant 0 : i32
    %c0_i32_0 = arith.constant 0 : i32
    %c0_i32_1 = arith.constant 0 : i32
    return %c0_i32, %arg0, %c0_i32_0 : i32, i32, i32
  }
  func.func @transform_1(%arg0: i32, %arg1: i32) -> (i32, i32) {
    %c0_i32 = arith.constant 0 : i32
    return %arg0, %arg1 : i32, i32
  }
}

</mosaic_0001>

<llo_original>
// kernel: tpu_custom_call.1
$region0: #{tpu_custom_call.1}
  #allocation0 [shape = 'u32[]', space=smem, size = 0x4, offset = 0x4, fixed_abs, tag = 'smem constant byte address 0x4 - core index']
  #allocation1 [shape = 'u32[144,128]{1,0:T(1,128)}', space=vmem, size = 0x12000, scoped, tag = 'internal scratch']
  %s0 = inlined_call_operand.hbm [shape: s32[1,8,128], index: 0, kind: input, shape index: {}]
  %s1 = inlined_call_operand.hbm [shape: f32[8,128], index: 1, kind: output, shape index: {}]
  %s2 = sld [smem:[#allocation0]]
  $region18: #{tpu_custom_call.1} parent=0
    _
  %s4 = ssub.s32 1, %s2
  %s5 = scalar_select 0, %s4, %s2
  $region1: #{tpu_custom_call.1} parent=0
    #allocation2 [shape = 'u8[4096]{0}', space=vmem, size = 0x1000, scoped, tag = 'input window, operand 0, single buffered']
    #allocation3 [shape = 's32[1]{0}', space=sflag, size = 0x4, scoped, tag = 'scoped memory for tpu_custom_call.1']
    #allocation4 [shape = 's32[1]{0}', space=sflag, size = 0x4, scoped, tag = 'scoped memory for tpu_custom_call.1']
    #allocation5 [shape = 'u8[4096]{0}', space=vmem, size = 0x1000, scoped, tag = 'output window, operand 0, single buffered']
    %6 = vsyncpa [#allocation3], 0
    %7 = vsyncpa [#allocation4], 0
    // Predicated region
    $region2: #{tpu_custom_call.1} parent=1 // pred_check
      _
    $region3: #{tpu_custom_call.1} parent=1 // pred_check_branch
      %9 = sbr.rel (0) target = $region5
    $region4: #{tpu_custom_call.1} parent=1 // pred_region
      %s11 = ssub.s32 128, 128
      %12 = vsyncadd [#allocation3], %s11
      %s14 = sshll.u32 [#allocation2], 4
      %s15 = int_to_ptr.vmem [resolvable:$true] %s14
      %17 = dma.hbm_to_vmem [thread:$0]  %s0, 128, %s15, [#allocation3]
    $region5: #{tpu_custom_call.1} parent=1 // pred_fallthru
      _
    // Predicated region
    $region6: #{tpu_custom_call.1} parent=1 // pred_check
      _
    $region7: #{tpu_custom_call.1} parent=1 // pred_check_branch
      %19 = sbr.rel (0) target = $region9
    $region8: #{tpu_custom_call.1} parent=1 // pred_region
      %20 = dma.done [#allocation3], 128
    $region9: #{tpu_custom_call.1} parent=1 // pred_fallthru
      _
    %s21 = smul.u32 0, 128
    %v22 = vlaneseq
    %v23 = vand.u32 %v22, 127
    %v24 = vstv %s21
    %v25 = vadd.s32 %v24, %v23
    %v26 = vld [vmem:[#allocation2] sm:$0xff]
    %27 = vset.pattern.permute.xlu0 0
    %28 = vperm.xlu0 %27, %v26
    %v29 = vpop.permute.xlu0 %28
    %vm30 = vcmp.eq.s32.totalorder %v29, %v25
    %v31 = vsel %vm30, 1, 0
    %32 = vset.pattern.permute.xlu0 1
    %33 = vperm.xlu0 %32, %v26
    %v34 = vpop.permute.xlu0 %33
    %vm35 = vcmp.eq.s32.totalorder %v34, %v25
    %v36 = vsel %vm35, 1, 0
    %v37 = vadd.s32 %v31, %v36
    %38 = vset.pattern.permute.xlu0 2
    %39 = vperm.xlu0 %38, %v26
    %v40 = vpop.permute.xlu0 %39
    %vm41 = vcmp.eq.s32.totalorder %v40, %v25
    %v42 = vsel %vm41, 1, 0
    %v43 = vadd.s32 %v37, %v42
    %44 = vset.pattern.permute.xlu0 3
    %45 = vperm.xlu0 %44, %v26
    %v46 = vpop.permute.xlu0 %45
    %vm47 = vcmp.eq.s32.totalorder %v46, %v25
    %v48 = vsel %vm47, 1, 0
    %v49 = vadd.s32 %v43, %v48
    %50 = vset.pattern.permute.xlu0 4
    %51 = vperm.xlu0 %50, %v26
    %v52 = vpop.permute.xlu0 %51
    %vm53 = vcmp.eq.s32.totalorder %v52, %v25
    %v54 = vsel %vm53, 1, 0
    %v55 = vadd.s32 %v49, %v54
    %56 = vset.pattern.permute.xlu0 5
    %57 = vperm.xlu0 %56, %v26
    %v58 = vpop.permute.xlu0 %57
    %vm59 = vcmp.eq.s32.totalorder %v58, %v25
    %v60 = vsel %vm59, 1, 0
    %v61 = vadd.s32 %v55, %v60
    %62 = vset.pattern.permute.xlu0 6
    %63 = vperm.xlu0 %62, %v26
    %v64 = vpop.permute.xlu0 %63
    %vm65 = vcmp.eq.s32.totalorder %v64, %v25
    %v66 = vsel %vm65, 1, 0
    %v67 = vadd.s32 %v61, %v66
    %68 = vset.pattern.permute.xlu0 7
    %69 = vperm.xlu0 %68, %v26
    %v70 = vpop.permute.xlu0 %69
    %vm71 = vcmp.eq.s32.totalorder %v70, %v25
    %v72 = vsel %vm71, 1, 0
    %v73 = vadd.s32 %v67, %v72
    %74 = vset.pattern.permute.xlu0 8
    %75 = vperm.xlu0 %74, %v26
    %v76 = vpop.permute.xlu0 %75
    %vm77 = vcmp.eq.s32.totalorder %v76, %v25
    %v78 = vsel %vm77, 1, 0
    %v79 = vadd.s32 %v73, %v78
    %80 = vset.pattern.permute.xlu0 9
    %81 = vperm.xlu0 %80, %v26
    %v82 = vpop.permute.xlu0 %81
    %vm83 = vcmp.eq.s32.totalorder %v82, %v25
    %v84 = vsel %vm83, 1, 0
    %v85 = vadd.s32 %v79, %v84
    %86 = vset.pattern.permute.xlu0 10
    %87 = vperm.xlu0 %86, %v26
    %v88 = vpop.permute.xlu0 %87
    %vm89 = vcmp.eq.s32.totalorder %v88, %v25
    %v90 = vsel %vm89, 1, 0
    %v91 = vadd.s32 %v85, %v90
    %92 = vset.pattern.permute.xlu0 11
    %93 = vperm.xlu0 %92, %v26
    %v94 = vpop.permute.xlu0 %93
    %vm95 = vcmp.eq.s32.totalorder %v94, %v25
    %v96 = vsel %vm95, 1, 0
    %v97 = vadd.s32 %v91, %v96
    %98 = vset.pattern.permute.xlu0 12
    %99 = vperm.xlu0 %98, %v26
    %v100 = vpop.permute.xlu0 %99
    %vm101 = vcmp.eq.s32.totalorder %v100, %v25
    %v102 = vsel %vm101, 1, 0
    %v103 = vadd.s32 %v97, %v102
    %104 = vset.pattern.permute.xlu0 13
    %105 = vperm.xlu0 %104, %v26
    %v106 = vpop.permute.xlu0 %105
    %vm107 = vcmp.eq.s32.totalorder %v106, %v25
    %v108 = vsel %vm107, 1, 0
    %v109 = vadd.s32 %v103, %v108
    %110 = vset.pattern.permute.xlu0 14
    %111 = vperm.xlu0 %110, %v26
    %v112 = vpop.permute.xlu0 %111
    %vm113 = vcmp.eq.s32.totalorder %v112, %v25
    %v114 = vsel %vm113, 1, 0
    %v115 = vadd.s32 %v109, %v114
    %116 = vset.pattern.permute.xlu0 15
    %117 = vperm.xlu0 %116, %v26
    %v118 = vpop.permute.xlu0 %117
    %vm119 = vcmp.eq.s32.totalorder %v118, %v25
    %v120 = vsel %vm119, 1, 0
    %v121 = vadd.s32 %v115, %v120
    %122 = vset.pattern.permute.xlu0 16
    %123 = vperm.xlu0 %122, %v26
    %v124 = vpop.permute.xlu0 %123
    %vm125 = vcmp.eq.s32.totalorder %v124, %v25
    %v126 = vsel %vm125, 1, 0
    %v127 = vadd.s32 %v121, %v126
    %128 = vset.pattern.permute.xlu0 17
    %129 = vperm.xlu0 %128, %v26
    %v130 = vpop.permute.xlu0 %129
    %vm131 = vcmp.eq.s32.totalorder %v130, %v25
    %v132 = vsel %vm131, 1, 0
    %v133 = vadd.s32 %v127, %v132
    %134 = vset.pattern.permute.xlu0 18
    %135 = vperm.xlu0 %134, %v26
    %v136 = vpop.permute.xlu0 %135
    %vm137 = vcmp.eq.s32.totalorder %v136, %v25
    %v138 = vsel %vm137, 1, 0
    %v139 = vadd.s32 %v133, %v138
    %140 = vset.pattern.permute.xlu0 19
    %141 = vperm.xlu0 %140, %v26
    %v142 = vpop.permute.xlu0 %141
    %vm143 = vcmp.eq.s32.totalorder %v142, %v25
    %v144 = vsel %vm143, 1, 0
    %v145 = vadd.s32 %v139, %v144
    %146 = vset.pattern.permute.xlu0 20
    %147 = vperm.xlu0 %146, %v26
    %v148 = vpop.permute.xlu0 %147
    %vm149 = vcmp.eq.s32.totalorder %v148, %v25
    %v150 = vsel %vm149, 1, 0
    %v151 = vadd.s32 %v145, %v150
    %152 = vset.pattern.permute.xlu0 21
    %153 = vperm.xlu0 %152, %v26
    %v154 = vpop.permute.xlu0 %153
    %vm155 = vcmp.eq.s32.totalorder %v154, %v25
    %v156 = vsel %vm155, 1, 0
    %v157 = vadd.s32 %v151, %v156
    %158 = vset.pattern.permute.xlu0 22
    %159 = vperm.xlu0 %158, %v26
    %v160 = vpop.permute.xlu0 %159
    %vm161 = vcmp.eq.s32.totalorder %v160, %v25
    %v162 = vsel %vm161, 1, 0
    %v163 = vadd.s32 %v157, %v162
    %164 = vset.pattern.permute.xlu0 23
    %165 = vperm.xlu0 %164, %v26
    %v166 = vpop.permute.xlu0 %165
    %vm167 = vcmp.eq.s32.totalorder %v166, %v25
    %v168 = vsel %vm167, 1, 0
    %v169 = vadd.s32 %v163, %v168
    %170 = vset.pattern.permute.xlu0 24
    %171 = vperm.xlu0 %170, %v26
    %v172 = vpop.permute.xlu0 %171
    %vm173 = vcmp.eq.s32.totalorder %v172, %v25
    %v174 = vsel %vm173, 1, 0
    %v175 = vadd.s32 %v169, %v174
    %176 = vset.pattern.permute.xlu0 25
    %177 = vperm.xlu0 %176, %v26
    %v178 = vpop.permute.xlu0 %177
    %vm179 = vcmp.eq.s32.totalorder %v178, %v25
    %v180 = vsel %vm179, 1, 0
    %v181 = vadd.s32 %v175, %v180
    %182 = vset.pattern.permute.xlu0 26
    %183 = vperm.xlu0 %182, %v26
    %v184 = vpop.permute.xlu0 %183
    %vm185 = vcmp.eq.s32.totalorder %v184, %v25
    %v186 = vsel %vm185, 1, 0
    %v187 = vadd.s32 %v181, %v186
    %188 = vset.pattern.permute.xlu0 27
    %189 = vperm.xlu0 %188, %v26
    %v190 = vpop.permute.xlu0 %189
    %vm191 = vcmp.eq.s32.totalorder %v190, %v25
    %v192 = vsel %vm191, 1, 0
    %v193 = vadd.s32 %v187, %v192
    %194 = vset.pattern.permute.xlu0 28
    %195 = vperm.xlu0 %194, %v26
    %v196 = vpop.permute.xlu0 %195
    %vm197 = vcmp.eq.s32.totalorder %v196, %v25
    %v198 = vsel %vm197, 1, 0
    %v199 = vadd.s32 %v193, %v198
    %200 = vset.pattern.permute.xlu0 29
    %201 = vperm.xlu0 %200, %v26
    %v202 = vpop.permute.xlu0 %201
    %vm203 = vcmp.eq.s32.totalorder %v202, %v25
    %v204 = vsel %vm203, 1, 0
    %v205 = vadd.s32 %v199, %v204
    %206 = vset.pattern.permute.xlu0 30
    %207 = vperm.xlu0 %206, %v26
    %v208 = vpop.permute.xlu0 %207
    %vm209 = vcmp.eq.s32.totalorder %v208, %v25
    %v210 = vsel %vm209, 1, 0
    %v211 = vadd.s32 %v205, %v210
    %212 = vset.pattern.permute.xlu0 31
    %213 = vperm.xlu0 %212, %v26
    %v214 = vpop.permute.xlu0 %213
    %vm215 = vcmp.eq.s32.totalorder %v214, %v25
    %v216 = vsel %vm215, 1, 0
    %v217 = vadd.s32 %v211, %v216
    %218 = vset.pattern.permute.xlu0 32
    %219 = vperm.xlu0 %218, %v26
    %v220 = vpop.permute.xlu0 %219
    %vm221 = vcmp.eq.s32.totalorder %v220, %v25
    %v222 = vsel %vm221, 1, 0
    %v223 = vadd.s32 %v217, %v222
    %224 = vset.pattern.permute.xlu0 33
    %225 = vperm.xlu0 %224, %v26
    %v226 = vpop.permute.xlu0 %225
    %vm227 = vcmp.eq.s32.totalorder %v226, %v25
    %v228 = vsel %vm227, 1, 0
    %v229 = vadd.s32 %v223, %v228
    %230 = vset.pattern.permute.xlu0 34
    %231 = vperm.xlu0 %230, %v26
    %v232 = vpop.permute.xlu0 %231
    %vm233 = vcmp.eq.s32.totalorder %v232, %v25
    %v234 = vsel %vm233, 1, 0
    %v235 = vadd.s32 %v229, %v234
    %236 = vset.pattern.permute.xlu0 35
    %237 = vperm.xlu0 %236, %v26
    %v238 = vpop.permute.xlu0 %237
    %vm239 = vcmp.eq.s32.totalorder %v238, %v25
    %v240 = vsel %vm239, 1, 0
    %v241 = vadd.s32 %v235, %v240
    %242 = vset.pattern.permute.xlu0 36
    %243 = vperm.xlu0 %242, %v26
    %v244 = vpop.permute.xlu0 %243
    %vm245 = vcmp.eq.s32.totalorder %v244, %v25
    %v246 = vsel %vm245, 1, 0
    %v247 = vadd.s32 %v241, %v246
    %248 = vset.pattern.permute.xlu0 37
    %249 = vperm.xlu0 %248, %v26
    %v250 = vpop.permute.xlu0 %249
    %vm251 = vcmp.eq.s32.totalorder %v250, %v25
    %v252 = vsel %vm251, 1, 0
    %v253 = vadd.s32 %v247, %v252
    %254 = vset.pattern.permute.xlu0 38
    %255 = vperm.xlu0 %254, %v26
    %v256 = vpop.permute.xlu0 %255
    %vm257 = vcmp.eq.s32.totalorder %v256, %v25
    %v258 = vsel %vm257, 1, 0
    %v259 = vadd.s32 %v253, %v258
    %260 = vset.pattern.permute.xlu0 39
    %261 = vperm.xlu0 %260, %v26
    %v262 = vpop.permute.xlu0 %261
    %vm263 = vcmp.eq.s32.totalorder %v262, %v25
    %v264 = vsel %vm263, 1, 0
    %v265 = vadd.s32 %v259, %v264
    %266 = vset.pattern.permute.xlu0 40
    %267 = vperm.xlu0 %266, %v26
    %v268 = vpop.permute.xlu0 %267
    %vm269 = vcmp.eq.s32.totalorder %v268, %v25
    %v270 = vsel %vm269, 1, 0
    %v271 = vadd.s32 %v265, %v270
    %272 = vset.pattern.permute.xlu0 41
    %273 = vperm.xlu0 %272, %v26
    %v274 = vpop.permute.xlu0 %273
    %vm275 = vcmp.eq.s32.totalorder %v274, %v25
    %v276 = vsel %vm275, 1, 0
    %v277 = vadd.s32 %v271, %v276
    %278 = vset.pattern.permute.xlu0 42
    %279 = vperm.xlu0 %278, %v26
    %v280 = vpop.permute.xlu0 %279
    %vm281 = vcmp.eq.s32.totalorder %v280, %v25
    %v282 = vsel %vm281, 1, 0
    %v283 = vadd.s32 %v277, %v282
    %284 = vset.pattern.permute.xlu0 43
    %285 = vperm.xlu0 %284, %v26
    %v286 = vpop.permute.xlu0 %285
    %vm287 = vcmp.eq.s32.totalorder %v286, %v25
    %v288 = vsel %vm287, 1, 0
    %v289 = vadd.s32 %v283, %v288
    %290 = vset.pattern.permute.xlu0 44
    %291 = vperm.xlu0 %290, %v26
    %v292 = vpop.permute.xlu0 %291
    %vm293 = vcmp.eq.s32.totalorder %v292, %v25
    %v294 = vsel %vm293, 1, 0
    %v295 = vadd.s32 %v289, %v294
    %296 = vset.pattern.permute.xlu0 45
    %297 = vperm.xlu0 %296, %v26
    %v298 = vpop.permute.xlu0 %297
    %vm299 = vcmp.eq.s32.totalorder %v298, %v25
    %v300 = vsel %vm299, 1, 0
    %v301 = vadd.s32 %v295, %v300
    %302 = vset.pattern.permute.xlu0 46
    %303 = vperm.xlu0 %302, %v26
    %v304 = vpop.permute.xlu0 %303
    %vm305 = vcmp.eq.s32.totalorder %v304, %v25
    %v306 = vsel %vm305, 1, 0
    %v307 = vadd.s32 %v301, %v306
    %308 = vset.pattern.permute.xlu0 47
    %309 = vperm.xlu0 %308, %v26
    %v310 = vpop.permute.xlu0 %309
    %vm311 = vcmp.eq.s32.totalorder %v310, %v25
    %v312 = vsel %vm311, 1, 0
    %v313 = vadd.s32 %v307, %v312
    %314 = vset.pattern.permute.xlu0 48
    %315 = vperm.xlu0 %314, %v26
    %v316 = vpop.permute.xlu0 %315
    %vm317 = vcmp.eq.s32.totalorder %v316, %v25
    %v318 = vsel %vm317, 1, 0
    %v319 = vadd.s32 %v313, %v318
    %320 = vset.pattern.permute.xlu0 49
    %321 = vperm.xlu0 %320, %v26
    %v322 = vpop.permute.xlu0 %321
    %vm323 = vcmp.eq.s32.totalorder %v322, %v25
    %v324 = vsel %vm323, 1, 0
    %v325 = vadd.s32 %v319, %v324
    %326 = vset.pattern.permute.xlu0 50
    %327 = vperm.xlu0 %326, %v26
    %v328 = vpop.permute.xlu0 %327
    %vm329 = vcmp.eq.s32.totalorder %v328, %v25
    %v330 = vsel %vm329, 1, 0
    %v331 = vadd.s32 %v325, %v330
    %332 = vset.pattern.permute.xlu0 51
    %333 = vperm.xlu0 %332, %v26
    %v334 = vpop.permute.xlu0 %333
    %vm335 = vcmp.eq.s32.totalorder %v334, %v25
    %v336 = vsel %vm335, 1, 0
    %v337 = vadd.s32 %v331, %v336
    %338 = vset.pattern.permute.xlu0 52
    %339 = vperm.xlu0 %338, %v26
    %v340 = vpop.permute.xlu0 %339
    %vm341 = vcmp.eq.s32.totalorder %v340, %v25
    %v342 = vsel %vm341, 1, 0
    %v343 = vadd.s32 %v337, %v342
    %344 = vset.pattern.permute.xlu0 53
    %345 = vperm.xlu0 %344, %v26
    %v346 = vpop.permute.xlu0 %345
    %vm347 = vcmp.eq.s32.totalorder %v346, %v25
    %v348 = vsel %vm347, 1, 0
    %v349 = vadd.s32 %v343, %v348
    %350 = vset.pattern.permute.xlu0 54
    %351 = vperm.xlu0 %350, %v26
    %v352 = vpop.permute.xlu0 %351
    %vm353 = vcmp.eq.s32.totalorder %v352, %v25
    %v354 = vsel %vm353, 1, 0
    %v355 = vadd.s32 %v349, %v354
    %356 = vset.pattern.permute.xlu0 55
    %357 = vperm.xlu0 %356, %v26
    %v358 = vpop.permute.xlu0 %357
    %vm359 = vcmp.eq.s32.totalorder %v358, %v25
    %v360 = vsel %vm359, 1, 0
    %v361 = vadd.s32 %v355, %v360
    %362 = vset.pattern.permute.xlu0 56
    %363 = vperm.xlu0 %362, %v26
    %v364 = vpop.permute.xlu0 %363
    %vm365 = vcmp.eq.s32.totalorder %v364, %v25
    %v366 = vsel %vm365, 1, 0
    %v367 = vadd.s32 %v361, %v366
    %368 = vset.pattern.permute.xlu0 57
    %369 = vperm.xlu0 %368, %v26
    %v370 = vpop.permute.xlu0 %369
    %vm371 = vcmp.eq.s32.totalorder %v370, %v25
    %v372 = vsel %vm371, 1, 0
    %v373 = vadd.s32 %v367, %v372
    %374 = vset.pattern.permute.xlu0 58
    %375 = vperm.xlu0 %374, %v26
    %v376 = vpop.permute.xlu0 %375
    %vm377 = vcmp.eq.s32.totalorder %v376, %v25
    %v378 = vsel %vm377, 1, 0
    %v379 = vadd.s32 %v373, %v378
    %380 = vset.pattern.permute.xlu0 59
    %381 = vperm.xlu0 %380, %v26
    %v382 = vpop.permute.xlu0 %381
    %vm383 = vcmp.eq.s32.totalorder %v382, %v25
    %v384 = vsel %vm383, 1, 0
    %v385 = vadd.s32 %v379, %v384
    %386 = vset.pattern.permute.xlu0 60
    %387 = vperm.xlu0 %386, %v26
    %v388 = vpop.permute.xlu0 %387
    %vm389 = vcmp.eq.s32.totalorder %v388, %v25
    %v390 = vsel %vm389, 1, 0
    %v391 = vadd.s32 %v385, %v390
    %392 = vset.pattern.permute.xlu0 61
    %393 = vperm.xlu0 %392, %v26
    %v394 = vpop.permute.xlu0 %393
    %vm395 = vcmp.eq.s32.totalorder %v394, %v25
    %v396 = vsel %vm395, 1, 0
    %v397 = vadd.s32 %v391, %v396
    %398 = vset.pattern.permute.xlu0 62
    %399 = vperm.xlu0 %398, %v26
    %v400 = vpop.permute.xlu0 %399
    %vm401 = vcmp.eq.s32.totalorder %v400, %v25
    %v402 = vsel %vm401, 1, 0
    %v403 = vadd.s32 %v397, %v402
    %404 = vset.pattern.permute.xlu0 63
    %405 = vperm.xlu0 %404, %v26
    %v406 = vpop.permute.xlu0 %405
    %vm407 = vcmp.eq.s32.totalorder %v406, %v25
    %v408 = vsel %vm407, 1, 0
    %v409 = vadd.s32 %v403, %v408
    %410 = vset.pattern.permute.xlu0 64
    %411 = vperm.xlu0 %410, %v26
    %v412 = vpop.permute.xlu0 %411
    %vm413 = vcmp.eq.s32.totalorder %v412, %v25
    %v414 = vsel %vm413, 1, 0
    %v415 = vadd.s32 %v409, %v414
    %416 = vset.pattern.permute.xlu0 65
    %417 = vperm.xlu0 %416, %v26
    %v418 = vpop.permute.xlu0 %417
    %vm419 = vcmp.eq.s32.totalorder %v418, %v25
    %v420 = vsel %vm419, 1, 0
    %v421 = vadd.s32 %v415, %v420
    %422 = vset.pattern.permute.xlu0 66
    %423 = vperm.xlu0 %422, %v26
    %v424 = vpop.permute.xlu0 %423
    %vm425 = vcmp.eq.s32.totalorder %v424, %v25
    %v426 = vsel %vm425, 1, 0
    %v427 = vadd.s32 %v421, %v426
    %428 = vset.pattern.permute.xlu0 67
    %429 = vperm.xlu0 %428, %v26
    %v430 = vpop.permute.xlu0 %429
    %vm431 = vcmp.eq.s32.totalorder %v430, %v25
    %v432 = vsel %vm431, 1, 0
    %v433 = vadd.s32 %v427, %v432
    %434 = vset.pattern.permute.xlu0 68
    %435 = vperm.xlu0 %434, %v26
    %v436 = vpop.permute.xlu0 %435
    %vm437 = vcmp.eq.s32.totalorder %v436, %v25
    %v438 = vsel %vm437, 1, 0
    %v439 = vadd.s32 %v433, %v438
    %440 = vset.pattern.permute.xlu0 69
    %441 = vperm.xlu0 %440, %v26
    %v442 = vpop.permute.xlu0 %441
    %vm443 = vcmp.eq.s32.totalorder %v442, %v25
    %v444 = vsel %vm443, 1, 0
    %v445 = vadd.s32 %v439, %v444
    %446 = vset.pattern.permute.xlu0 70
    %447 = vperm.xlu0 %446, %v26
    %v448 = vpop.permute.xlu0 %447
    %vm449 = vcmp.eq.s32.totalorder %v448, %v25
    %v450 = vsel %vm449, 1, 0
    %v451 = vadd.s32 %v445, %v450
    %452 = vset.pattern.permute.xlu0 71
    %453 = vperm.xlu0 %452, %v26
    %v454 = vpop.permute.xlu0 %453
    %vm455 = vcmp.eq.s32.totalorder %v454, %v25
    %v456 = vsel %vm455, 1, 0
    %v457 = vadd.s32 %v451, %v456
    %458 = vset.pattern.permute.xlu0 72
    %459 = vperm.xlu0 %458, %v26
    %v460 = vpop.permute.xlu0 %459
    %vm461 = vcmp.eq.s32.totalorder %v460, %v25
    %v462 = vsel %vm461, 1, 0
    %v463 = vadd.s32 %v457, %v462
    %464 = vset.pattern.permute.xlu0 73
    %465 = vperm.xlu0 %464, %v26
    %v466 = vpop.permute.xlu0 %465
    %vm467 = vcmp.eq.s32.totalorder %v466, %v25
    %v468 = vsel %vm467, 1, 0
    %v469 = vadd.s32 %v463, %v468
    %470 = vset.pattern.permute.xlu0 74
    %471 = vperm.xlu0 %470, %v26
    %v472 = vpop.permute.xlu0 %471
    %vm473 = vcmp.eq.s32.totalorder %v472, %v25
    %v474 = vsel %vm473, 1, 0
    %v475 = vadd.s32 %v469, %v474
    %476 = vset.pattern.permute.xlu0 75
    %477 = vperm.xlu0 %476, %v26
    %v478 = vpop.permute.xlu0 %477
    %vm479 = vcmp.eq.s32.totalorder %v478, %v25
    %v480 = vsel %vm479, 1, 0
    %v481 = vadd.s32 %v475, %v480
    %482 = vset.pattern.permute.xlu0 76
    %483 = vperm.xlu0 %482, %v26
    %v484 = vpop.permute.xlu0 %483
    %vm485 = vcmp.eq.s32.totalorder %v484, %v25
    %v486 = vsel %vm485, 1, 0
    %v487 = vadd.s32 %v481, %v486
    %488 = vset.pattern.permute.xlu0 77
    %489 = vperm.xlu0 %488, %v26
    %v490 = vpop.permute.xlu0 %489
    %vm491 = vcmp.eq.s32.totalorder %v490, %v25
    %v492 = vsel %vm491, 1, 0
    %v493 = vadd.s32 %v487, %v492
    %494 = vset.pattern.permute.xlu0 78
    %495 = vperm.xlu0 %494, %v26
    %v496 = vpop.permute.xlu0 %495
    %vm497 = vcmp.eq.s32.totalorder %v496, %v25
    %v498 = vsel %vm497, 1, 0
    %v499 = vadd.s32 %v493, %v498
    %500 = vset.pattern.permute.xlu0 79
    %501 = vperm.xlu0 %500, %v26
    %v502 = vpop.permute.xlu0 %501
    %vm503 = vcmp.eq.s32.totalorder %v502, %v25
    %v504 = vsel %vm503, 1, 0
    %v505 = vadd.s32 %v499, %v504
    %506 = vset.pattern.permute.xlu0 80
    %507 = vperm.xlu0 %506, %v26
    %v508 = vpop.permute.xlu0 %507
    %vm509 = vcmp.eq.s32.totalorder %v508, %v25
    %v510 = vsel %vm509, 1, 0
    %v511 = vadd.s32 %v505, %v510
    %512 = vset.pattern.permute.xlu0 81
    %513 = vperm.xlu0 %512, %v26
    %v514 = vpop.permute.xlu0 %513
    %vm515 = vcmp.eq.s32.totalorder %v514, %v25
    %v516 = vsel %vm515, 1, 0
    %v517 = vadd.s32 %v511, %v516
    %518 = vset.pattern.permute.xlu0 82
    %519 = vperm.xlu0 %518, %v26
    %v520 = vpop.permute.xlu0 %519
    %vm521 = vcmp.eq.s32.totalorder %v520, %v25
    %v522 = vsel %vm521, 1, 0
    %v523 = vadd.s32 %v517, %v522
    %524 = vset.pattern.permute.xlu0 83
    %525 = vperm.xlu0 %524, %v26
    %v526 = vpop.permute.xlu0 %525
    %vm527 = vcmp.eq.s32.totalorder %v526, %v25
    %v528 = vsel %vm527, 1, 0
    %v529 = vadd.s32 %v523, %v528
    %530 = vset.pattern.permute.xlu0 84
    %531 = vperm.xlu0 %530, %v26
    %v532 = vpop.permute.xlu0 %531
    %vm533 = vcmp.eq.s32.totalorder %v532, %v25
    %v534 = vsel %vm533, 1, 0
    %v535 = vadd.s32 %v529, %v534
    %536 = vset.pattern.permute.xlu0 85
    %537 = vperm.xlu0 %536, %v26
    %v538 = vpop.permute.xlu0 %537
    %vm539 = vcmp.eq.s32.totalorder %v538, %v25
    %v540 = vsel %vm539, 1, 0
    %v541 = vadd.s32 %v535, %v540
    %542 = vset.pattern.permute.xlu0 86
    %543 = vperm.xlu0 %542, %v26
    %v544 = vpop.permute.xlu0 %543
    %vm545 = vcmp.eq.s32.totalorder %v544, %v25
    %v546 = vsel %vm545, 1, 0
    %v547 = vadd.s32 %v541, %v546
    %548 = vset.pattern.permute.xlu0 87
    %549 = vperm.xlu0 %548, %v26
    %v550 = vpop.permute.xlu0 %549
    %vm551 = vcmp.eq.s32.totalorder %v550, %v25
    %v552 = vsel %vm551, 1, 0
    %v553 = vadd.s32 %v547, %v552
    %554 = vset.pattern.permute.xlu0 88
    %555 = vperm.xlu0 %554, %v26
    %v556 = vpop.permute.xlu0 %555
    %vm557 = vcmp.eq.s32.totalorder %v556, %v25
    %v558 = vsel %vm557, 1, 0
    %v559 = vadd.s32 %v553, %v558
    %560 = vset.pattern.permute.xlu0 89
    %561 = vperm.xlu0 %560, %v26
    %v562 = vpop.permute.xlu0 %561
    %vm563 = vcmp.eq.s32.totalorder %v562, %v25
    %v564 = vsel %vm563, 1, 0
    %v565 = vadd.s32 %v559, %v564
    %566 = vset.pattern.permute.xlu0 90
    %567 = vperm.xlu0 %566, %v26
    %v568 = vpop.permute.xlu0 %567
    %vm569 = vcmp.eq.s32.totalorder %v568, %v25
    %v570 = vsel %vm569, 1, 0
    %v571 = vadd.s32 %v565, %v570
    %572 = vset.pattern.permute.xlu0 91
    %573 = vperm.xlu0 %572, %v26
    %v574 = vpop.permute.xlu0 %573
    %vm575 = vcmp.eq.s32.totalorder %v574, %v25
    %v576 = vsel %vm575, 1, 0
    %v577 = vadd.s32 %v571, %v576
    %578 = vset.pattern.permute.xlu0 92
    %579 = vperm.xlu0 %578, %v26
    %v580 = vpop.permute.xlu0 %579
    %vm581 = vcmp.eq.s32.totalorder %v580, %v25
    %v582 = vsel %vm581, 1, 0
    %v583 = vadd.s32 %v577, %v582
    %584 = vset.pattern.permute.xlu0 93
    %585 = vperm.xlu0 %584, %v26
    %v586 = vpop.permute.xlu0 %585
    %vm587 = vcmp.eq.s32.totalorder %v586, %v25
    %v588 = vsel %vm587, 1, 0
    %v589 = vadd.s32 %v583, %v588
    %590 = vset.pattern.permute.xlu0 94
    %591 = vperm.xlu0 %590, %v26
    %v592 = vpop.permute.xlu0 %591
    %vm593 = vcmp.eq.s32.totalorder %v592, %v25
    %v594 = vsel %vm593, 1, 0
    %v595 = vadd.s32 %v589, %v594
    %596 = vset.pattern.permute.xlu0 95
    %597 = vperm.xlu0 %596, %v26
    %v598 = vpop.permute.xlu0 %597
    %vm599 = vcmp.eq.s32.totalorder %v598, %v25
    %v600 = vsel %vm599, 1, 0
    %v601 = vadd.s32 %v595, %v600
    %602 = vset.pattern.permute.xlu0 96
    %603 = vperm.xlu0 %602, %v26
    %v604 = vpop.permute.xlu0 %603
    %vm605 = vcmp.eq.s32.totalorder %v604, %v25
    %v606 = vsel %vm605, 1, 0
    %v607 = vadd.s32 %v601, %v606
    %608 = vset.pattern.permute.xlu0 97
    %609 = vperm.xlu0 %608, %v26
    %v610 = vpop.permute.xlu0 %609
    %vm611 = vcmp.eq.s32.totalorder %v610, %v25
    %v612 = vsel %vm611, 1, 0
    %v613 = vadd.s32 %v607, %v612
    %614 = vset.pattern.permute.xlu0 98
    %615 = vperm.xlu0 %614, %v26
    %v616 = vpop.permute.xlu0 %615
    %vm617 = vcmp.eq.s32.totalorder %v616, %v25
    %v618 = vsel %vm617, 1, 0
    %v619 = vadd.s32 %v613, %v618
    %620 = vset.pattern.permute.xlu0 99
    %621 = vperm.xlu0 %620, %v26
    %v622 = vpop.permute.xlu0 %621
    %vm623 = vcmp.eq.s32.totalorder %v622, %v25
    %v624 = vsel %vm623, 1, 0
    %v625 = vadd.s32 %v619, %v624
    %626 = vset.pattern.permute.xlu0 100
    %627 = vperm.xlu0 %626, %v26
    %v628 = vpop.permute.xlu0 %627
    %vm629 = vcmp.eq.s32.totalorder %v628, %v25
    %v630 = vsel %vm629, 1, 0
    %v631 = vadd.s32 %v625, %v630
    %632 = vset.pattern.permute.xlu0 101
    %633 = vperm.xlu0 %632, %v26
    %v634 = vpop.permute.xlu0 %633
    %vm635 = vcmp.eq.s32.totalorder %v634, %v25
    %v636 = vsel %vm635, 1, 0
    %v637 = vadd.s32 %v631, %v636
    %638 = vset.pattern.permute.xlu0 102
    %639 = vperm.xlu0 %638, %v26
    %v640 = vpop.permute.xlu0 %639
    %vm641 = vcmp.eq.s32.totalorder %v640, %v25
    %v642 = vsel %vm641, 1, 0
    %v643 = vadd.s32 %v637, %v642
    %644 = vset.pattern.permute.xlu0 103
    %645 = vperm.xlu0 %644, %v26
    %v646 = vpop.permute.xlu0 %645
    %vm647 = vcmp.eq.s32.totalorder %v646, %v25
    %v648 = vsel %vm647, 1, 0
    %v649 = vadd.s32 %v643, %v648
    %650 = vset.pattern.permute.xlu0 104
    %651 = vperm.xlu0 %650, %v26
    %v652 = vpop.permute.xlu0 %651
    %vm653 = vcmp.eq.s32.totalorder %v652, %v25
    %v654 = vsel %vm653, 1, 0
    %v655 = vadd.s32 %v649, %v654
    %656 = vset.pattern.permute.xlu0 105
    %657 = vperm.xlu0 %656, %v26
    %v658 = vpop.permute.xlu0 %657
    %vm659 = vcmp.eq.s32.totalorder %v658, %v25
    %v660 = vsel %vm659, 1, 0
    %v661 = vadd.s32 %v655, %v660
    %662 = vset.pattern.permute.xlu0 106
    %663 = vperm.xlu0 %662, %v26
    %v664 = vpop.permute.xlu0 %663
    %vm665 = vcmp.eq.s32.totalorder %v664, %v25
    %v666 = vsel %vm665, 1, 0
    %v667 = vadd.s32 %v661, %v666
    %668 = vset.pattern.permute.xlu0 107
    %669 = vperm.xlu0 %668, %v26
    %v670 = vpop.permute.xlu0 %669
    %vm671 = vcmp.eq.s32.totalorder %v670, %v25
    %v672 = vsel %vm671, 1, 0
    %v673 = vadd.s32 %v667, %v672
    %674 = vset.pattern.permute.xlu0 108
    %675 = vperm.xlu0 %674, %v26
    %v676 = vpop.permute.xlu0 %675
    %vm677 = vcmp.eq.s32.totalorder %v676, %v25
    %v678 = vsel %vm677, 1, 0
    %v679 = vadd.s32 %v673, %v678
    %680 = vset.pattern.permute.xlu0 109
    %681 = vperm.xlu0 %680, %v26
    %v682 = vpop.permute.xlu0 %681
    %vm683 = vcmp.eq.s32.totalorder %v682, %v25
    %v684 = vsel %vm683, 1, 0
    %v685 = vadd.s32 %v679, %v684
    %686 = vset.pattern.permute.xlu0 110
    %687 = vperm.xlu0 %686, %v26
    %v688 = vpop.permute.xlu0 %687
    %vm689 = vcmp.eq.s32.totalorder %v688, %v25
    %v690 = vsel %vm689, 1, 0
    %v691 = vadd.s32 %v685, %v690
    %692 = vset.pattern.permute.xlu0 111
    %693 = vperm.xlu0 %692, %v26
    %v694 = vpop.permute.xlu0 %693
    %vm695 = vcmp.eq.s32.totalorder %v694, %v25
    %v696 = vsel %vm695, 1, 0
    %v697 = vadd.s32 %v691, %v696
    %698 = vset.pattern.permute.xlu0 112
    %699 = vperm.xlu0 %698, %v26
    %v700 = vpop.permute.xlu0 %699
    %vm701 = vcmp.eq.s32.totalorder %v700, %v25
    %v702 = vsel %vm701, 1, 0
    %v703 = vadd.s32 %v697, %v702
    %704 = vset.pattern.permute.xlu0 113
    %705 = vperm.xlu0 %704, %v26
    %v706 = vpop.permute.xlu0 %705
    %vm707 = vcmp.eq.s32.totalorder %v706, %v25
    %v708 = vsel %vm707, 1, 0
    %v709 = vadd.s32 %v703, %v708
    %710 = vset.pattern.permute.xlu0 114
    %711 = vperm.xlu0 %710, %v26
    %v712 = vpop.permute.xlu0 %711
    %vm713 = vcmp.eq.s32.totalorder %v712, %v25
    %v714 = vsel %vm713, 1, 0
    %v715 = vadd.s32 %v709, %v714
    %716 = vset.pattern.permute.xlu0 115
    %717 = vperm.xlu0 %716, %v26
    %v718 = vpop.permute.xlu0 %717
    %vm719 = vcmp.eq.s32.totalorder %v718, %v25
    %v720 = vsel %vm719, 1, 0
    %v721 = vadd.s32 %v715, %v720
    %722 = vset.pattern.permute.xlu0 116
    %723 = vperm.xlu0 %722, %v26
    %v724 = vpop.permute.xlu0 %723
    %vm725 = vcmp.eq.s32.totalorder %v724, %v25
    %v726 = vsel %vm725, 1, 0
    %v727 = vadd.s32 %v721, %v726
    %728 = vset.pattern.permute.xlu0 117
    %729 = vperm.xlu0 %728, %v26
    %v730 = vpop.permute.xlu0 %729
    %vm731 = vcmp.eq.s32.totalorder %v730, %v25
    %v732 = vsel %vm731, 1, 0
    %v733 = vadd.s32 %v727, %v732
    %734 = vset.pattern.permute.xlu0 118
    %735 = vperm.xlu0 %734, %v26
    %v736 = vpop.permute.xlu0 %735
    %vm737 = vcmp.eq.s32.totalorder %v736, %v25
    %v738 = vsel %vm737, 1, 0
    %v739 = vadd.s32 %v733, %v738
    %740 = vset.pattern.permute.xlu0 119
    %741 = vperm.xlu0 %740, %v26
    %v742 = vpop.permute.xlu0 %741
    %vm743 = vcmp.eq.s32.totalorder %v742, %v25
    %v744 = vsel %vm743, 1, 0
    %v745 = vadd.s32 %v739, %v744
    %746 = vset.pattern.permute.xlu0 120
    %747 = vperm.xlu0 %746, %v26
    %v748 = vpop.permute.xlu0 %747
    %vm749 = vcmp.eq.s32.totalorder %v748, %v25
    %v750 = vsel %vm749, 1, 0
    %v751 = vadd.s32 %v745, %v750
    %752 = vset.pattern.permute.xlu0 121
    %753 = vperm.xlu0 %752, %v26
    %v754 = vpop.permute.xlu0 %753
    %vm755 = vcmp.eq.s32.totalorder %v754, %v25
    %v756 = vsel %vm755, 1, 0
    %v757 = vadd.s32 %v751, %v756
    %758 = vset.pattern.permute.xlu0 122
    %759 = vperm.xlu0 %758, %v26
    %v760 = vpop.permute.xlu0 %759
    %vm761 = vcmp.eq.s32.totalorder %v760, %v25
    %v762 = vsel %vm761, 1, 0
    %v763 = vadd.s32 %v757, %v762
    %764 = vset.pattern.permute.xlu0 123
    %765 = vperm.xlu0 %764, %v26
    %v766 = vpop.permute.xlu0 %765
    %vm767 = vcmp.eq.s32.totalorder %v766, %v25
    %v768 = vsel %vm767, 1, 0
    %v769 = vadd.s32 %v763, %v768
    %770 = vset.pattern.permute.xlu0 124
    %771 = vperm.xlu0 %770, %v26
    %v772 = vpop.permute.xlu0 %771
    %vm773 = vcmp.eq.s32.totalorder %v772, %v25
    %v774 = vsel %vm773, 1, 0
    %v775 = vadd.s32 %v769, %v774
    %776 = vset.pattern.permute.xlu0 125
    %777 = vperm.xlu0 %776, %v26
    %v778 = vpop.permute.xlu0 %777
    %vm779 = vcmp.eq.s32.totalorder %v778, %v25
    %v780 = vsel %vm779, 1, 0
    %v781 = vadd.s32 %v775, %v780
    %782 = vset.pattern.permute.xlu0 126
    %783 = vperm.xlu0 %782, %v26
    %v784 = vpop.permute.xlu0 %783
    %vm785 = vcmp.eq.s32.totalorder %v784, %v25
    %v786 = vsel %vm785, 1, 0
    %v787 = vadd.s32 %v781, %v786
    %788 = vset.pattern.permute.xlu0 127
    %789 = vperm.xlu0 %788, %v26
    %v790 = vpop.permute.xlu0 %789
    %vm791 = vcmp.eq.s32.totalorder %v790, %v25
    %v792 = vsel %vm791, 1, 0
    %v793 = vadd.s32 %v787, %v792
    %v794 = vcvt.s32.f32 %v793
    %795 = vst [vmem:[#allocation5] sm:$0xff] %v794
    // Predicated region
    $region10: #{tpu_custom_call.1} parent=1 // pred_check
      _
    $region11: #{tpu_custom_call.1} parent=1 // pred_check_branch
      %797 = sbr.rel (0) target = $region13
    $region12: #{tpu_custom_call.1} parent=1 // pred_region
      %s799 = ssub.s32 128, 128
      %800 = vsyncadd [#allocation4], %s799
      %s802 = sshll.u32 [#allocation5], 4
      %s803 = int_to_ptr.vmem [resolvable:$true] %s802
      %805 = dma.vmem_to_hbm [thread:$0]  %s803, 128, %s1, [#allocation4]
    $region13: #{tpu_custom_call.1} parent=1 // pred_fallthru
      _
    // Predicated region
    $region14: #{tpu_custom_call.1} parent=1 // pred_check
      _
    $region15: #{tpu_custom_call.1} parent=1 // pred_check_branch
      %807 = sbr.rel (0) target = $region17
    $region16: #{tpu_custom_call.1} parent=1 // pred_region
      %808 = dma.done [#allocation4], 128
    $region17: #{tpu_custom_call.1} parent=1 // pred_fallthru
      _
    %809 = vsyncpa [#allocation3], 1
    %810 = vsyncpa [#allocation4], 1

</llo_original>
